<compile_context>
chip_gen: v6e
topology: v6e:2x2x1
jax: 0.10.0
libtpu: 0.0.40
codegen_flags: <defaults>
</compile_context>

<pallas_src>
import functools
import math

import jax
import jax.numpy as jnp
from jax import lax
from jax.experimental import pallas as pl
from jax.experimental.pallas import tpu as pltpu


def _attention_kernel(q_ref, k_ref, v_ref,
                      wq_ref, bq_ref, wk_ref, bk_ref, wv_ref, bv_ref,
                      wm_ref, bm_ref,
                      o_ref,
                      kh_cache, vh_cache, attn_acc,
                      *, n_heads, head_dim, n_valid_keys):
    """One grid step = one (batch b, query tile t).

    q_ref            : (d_model, TQ)    bf16 query slab for this tile
    k_ref, v_ref     : (d_model, N_pad) bf16 key/value slabs for batch b
    wq/wk/wv/wm_ref  : (d_model, d_model) bf16 head-permuted weights
    bq/bk/bv/bm_ref  : (d_model, 1) f32 head-permuted biases
    o_ref            : (d_model, TQ) f32 output tile
    kh_cache/vh_cache: (d_model, N_pad) bf16 per-batch projected K/V cache
    attn_acc         : (d_model, TQ) bf16 per-head attention staging buffer
    """
    bf = jnp.bfloat16
    f32 = jnp.float32

    t = pl.program_id(1)

    # --- K/V projections: computed once per batch (t == 0), cached in VMEM
    # scratch and reused for every query tile of this batch.
    @pl.when(t == 0)
    def _project_kv():
        kh = jnp.dot(wk_ref[...], k_ref[...],
                     preferred_element_type=f32) + bk_ref[...]
        vh = jnp.dot(wv_ref[...], v_ref[...],
                     preferred_element_type=f32) + bv_ref[...]
        kh_cache[...] = kh.astype(bf)
        vh_cache[...] = vh.astype(bf)

    # --- Q projection for this tile (1/sqrt(head_dim) pre-folded into Wq/bq).
    qh_all = (jnp.dot(wq_ref[...], q_ref[...], preferred_element_type=f32)
              + bq_ref[...]).astype(bf)                       # (d_model, TQ)

    n_keys = kh_cache.shape[-1]
    if n_valid_keys < n_keys:
        key_idx = lax.broadcasted_iota(jnp.int32, (1, n_keys), 1)
        neg_bias = jnp.where(key_idx < n_valid_keys, 0.0, -1e30).astype(f32)
    else:
        neg_bias = None

    # --- per-head attention; head h owns rows [h*dim, (h+1)*dim) (contiguous).
    for h in range(n_heads):
        r0, r1 = h * head_dim, (h + 1) * head_dim
        qh = qh_all[r0:r1, :]          # bf16 (dim, TQ)
        kh = kh_cache[r0:r1, :]        # bf16 (dim, N_pad)
        vh = vh_cache[r0:r1, :]        # bf16 (dim, N_pad)

        # scores[n, m] = sum_d q[d, n] * k[d, m]   (contract dim-0 of both)
        scores = lax.dot_general(qh, kh, (((0,), (0,)), ((), ())),
                                 preferred_element_type=f32)   # (TQ, N_pad)
        if neg_bias is not None:
            scores = scores + neg_bias

        # softmax over keys (f32 math; approx reciprocal -> EUP slot)
        scores = scores - jnp.max(scores, axis=-1, keepdims=True)
        p = jnp.exp(scores)
        p = p * pl.reciprocal(jnp.sum(p, axis=-1, keepdims=True), approx=True)

        # attn[d, n] = sum_m v[d, m] * p[n, m]     (contract dim-1 of both)
        attn_acc[r0:r1, :] = lax.dot_general(
            vh, p.astype(bf), (((1,), (1,)), ((), ())),
            preferred_element_type=f32).astype(bf)

    # --- single merge matmul across all heads + bias.
    out = jnp.dot(wm_ref[...], attn_acc[...],
                  preferred_element_type=f32) + bm_ref[...]
    o_ref[...] = out.astype(o_ref.dtype)


def attention_pallas(query, key, value, params, *, n_heads):
    """query/key/value: (B, d_model, N) float32."""
    Wq, bq, Wk, bk, Wv, bv, Wm, bm = params
    B, d_model, N = query.shape
    assert d_model % n_heads == 0, "d_model must be divisible by n_heads"
    dim = d_model // n_heads
    H = n_heads
    assert dim % 8 == 0, "head_dim must be a multiple of 8 (sublane alignment)"

    bf = jnp.bfloat16
    f32 = jnp.float32
    scale = 1.0 / math.sqrt(dim)

    # PyTorch `.view(b, dim, n_heads, -1)` => channel c = d*H + h.
    # Permute projection rows so head h's `dim` channels are contiguous:
    #   W_p[h*dim + d, :] = W[d*H + h, :]
    def perm_rows(W):
        return W.reshape(dim, H, d_model).transpose(1, 0, 2).reshape(d_model, d_model)

    def perm_bias(b_):
        return b_.reshape(dim, H).T.reshape(d_model, 1)

    # Fold 1/sqrt(dim) into Q projection weight & bias (one-time, zero runtime).
    Wq_p = (perm_rows(Wq) * scale).astype(bf)
    bq_p = (perm_bias(bq) * scale).astype(f32)
    Wk_p, bk_p = perm_rows(Wk).astype(bf), perm_bias(bk).astype(f32)
    Wv_p, bv_p = perm_rows(Wv).astype(bf), perm_bias(bv).astype(f32)
    # Merge consumes channel c = d*H + h; permute its columns the same way:
    #   Wm_p[:, h*dim + d] = Wm[:, d*H + h]
    Wm_p = Wm.reshape(d_model, dim, H).transpose(0, 2, 1).reshape(
        d_model, d_model).astype(bf)
    bm_p = bm.reshape(d_model, 1).astype(f32)

    # Lane-dense padding of the sequence axis + generation-aware query tile.
    n_pad = -(-N // 128) * 128
    try:
        vmem_cap = int(pltpu.get_tpu_info().vmem_capacity_bytes)
    except Exception:
        vmem_cap = 128 << 20
    tq_cap = 512 if vmem_cap >= (96 << 20) else 256      # 256 on 64-MiB parts
    tq = min(n_pad, tq_cap)
    n_pad = -(-n_pad // tq) * tq
    n_q_tiles = n_pad // tq

    def pad_cast(x):
        x = x.astype(bf)                                  # halve DMA bytes
        if x.shape[-1] != n_pad:
            x = jnp.pad(x, ((0, 0), (0, 0), (0, n_pad - x.shape[-1])))
        return x

    q_p, k_p, v_p = pad_cast(query), pad_cast(key), pad_cast(value)

    # VMEM budget estimate (double-buffered blocks + scratch + temporaries).
    est = (2 * d_model * tq * 2                    # q tile (bf16, 2 bufs)
           + 2 * 2 * d_model * n_pad * 2           # k, v slabs (bf16, 2 bufs)
           + 2 * d_model * tq * 4                  # out tile (f32, 2 bufs)
           + 2 * (4 * d_model * d_model * 2 + 4 * d_model * 4)   # weights+biases
           + 2 * d_model * n_pad * 2 + d_model * tq * 2          # scratch
           + 3 * tq * n_pad * 4 + 4 * d_model * max(tq, n_pad) * 4)  # temps
    vmem_limit = int(min(max(2 * est + (8 << 20), 32 << 20),
                         int(vmem_cap * 0.9)))

    kernel = functools.partial(_attention_kernel, n_heads=H, head_dim=dim,
                               n_valid_keys=N)

    q_spec = pl.BlockSpec((None, d_model, tq), lambda b, t: (b, 0, t))
    kv_spec = pl.BlockSpec((None, d_model, n_pad), lambda b, t: (b, 0, 0))
    w_spec = pl.BlockSpec((d_model, d_model), lambda b, t: (0, 0))
    b_spec = pl.BlockSpec((d_model, 1), lambda b, t: (0, 0))
    out_spec = pl.BlockSpec((None, d_model, tq), lambda b, t: (b, 0, t))

    out = pl.pallas_call(
        kernel,
        out_shape=jax.ShapeDtypeStruct((B, d_model, n_pad), jnp.float32),
        grid=(B, n_q_tiles),
        in_specs=[q_spec, kv_spec, kv_spec,          # query, key, value
                  w_spec, b_spec,                    # Wq, bq
                  w_spec, b_spec,                    # Wk, bk
                  w_spec, b_spec,                    # Wv, bv
                  w_spec, b_spec],                   # Wm, bm
        out_specs=out_spec,
        scratch_shapes=[pltpu.VMEM((d_model, n_pad), jnp.bfloat16),   # K cache
                        pltpu.VMEM((d_model, n_pad), jnp.bfloat16),   # V cache
                        pltpu.VMEM((d_model, tq), jnp.bfloat16)],     # attn acc
        compiler_params=pltpu.CompilerParams(
            # batch axis megacore-sharded; query-tile axis "arbitrary" so the
            # per-batch K/V cache (filled at t == 0) is never split across TCs.
            dimension_semantics=("parallel", "arbitrary"),
            vmem_limit_bytes=vmem_limit),
    )(q_p, k_p, v_p,
      Wq_p, bq_p, Wk_p, bk_p, Wv_p, bv_p, Wm_p, bm_p)

    return out[..., :N]


def attention_reference(query, key, value, params, *, n_heads):
    """Pure-JAX reference mirroring the PyTorch forward exactly (f32)."""
    Wq, bq, Wk, bk, Wv, bv, Wm, bm = params
    B, d_model, N = query.shape
    dim = d_model // n_heads

    def conv1x1(W, b, x):  # (B, C, N) -> (B, C, N)
        return jnp.einsum('oc,bcn->bon', W, x) + b[None, :, None]

    q = conv1x1(Wq, bq, query).reshape(B, dim, n_heads, N)
    k = conv1x1(Wk, bk, key).reshape(B, dim, n_heads, N)
    v = conv1x1(Wv, bv, value).reshape(B, dim, n_heads, N)
    scores = jnp.einsum('bdhn,bdhm->bhnm', q, k) / jnp.sqrt(jnp.float32(dim))
    attn = jnp.einsum('bhnm,bdhm->bdhn', jax.nn.softmax(scores, axis=-1), v)
    return conv1x1(Wm, bm, attn.reshape(B, d_model, N))


if __name__ == "__main__":
    B, n_heads, d_model, N = 2, 4, 32, 16

    key0 = jax.random.PRNGKey(0)
    keys = jax.random.split(key0, 12)

    def w(k):  # deterministic synthetic Conv1d(1x1) weight, shape (out, in)
        return 0.1 * jax.random.normal(k, (d_model, d_model), dtype=jnp.float32)

    def bias(k):
        return 0.1 * jax.random.normal(k, (d_model,), dtype=jnp.float32)

    params = (w(keys[0]), bias(keys[1]),   # Wq, bq
              w(keys[2]), bias(keys[3]),   # Wk, bk
              w(keys[4]), bias(keys[5]),   # Wv, bv
              w(keys[6]), bias(keys[7]))   # Wm, bm  (merge)

    query = jax.random.normal(keys[8], (B, d_model, N), dtype=jnp.float32)
    key_ = jax.random.normal(keys[9], (B, d_model, N), dtype=jnp.float32)
    value = jax.random.normal(keys[10], (B, d_model, N), dtype=jnp.float32)

    out = attention_pallas(query, key_, value, params, n_heads=n_heads)
    out = jax.block_until_ready(out)

    ref = attention_reference(query, key_, value, params, n_heads=n_heads)
    assert out.shape == (B, d_model, N)
    max_err = float(jnp.max(jnp.abs(out - ref)))
    # bf16 MXU operands/activations + approx reciprocal => loosened tolerance
    # vs the f32 reference.
    assert jnp.allclose(out, ref, rtol=5e-2, atol=5e-2), max_err

    print("KERNEL_OK")
</pallas_src>

<mosaic_0001>
module attributes {stable_mosaic.version = 11 : i64} {
  func.func @_attention_kernel(%arg0: i32, %arg1: i32, %arg2: memref<1x32x128xbf16, #tpu.memory_space<vmem>>, %arg3: memref<1x32x128xbf16, #tpu.memory_space<vmem>>, %arg4: memref<1x32x128xbf16, #tpu.memory_space<vmem>>, %arg5: memref<32x32xbf16, #tpu.memory_space<vmem>>, %arg6: memref<32x1xf32, #tpu.memory_space<vmem>>, %arg7: memref<32x32xbf16, #tpu.memory_space<vmem>>, %arg8: memref<32x1xf32, #tpu.memory_space<vmem>>, %arg9: memref<32x32xbf16, #tpu.memory_space<vmem>>, %arg10: memref<32x1xf32, #tpu.memory_space<vmem>>, %arg11: memref<32x32xbf16, #tpu.memory_space<vmem>>, %arg12: memref<32x1xf32, #tpu.memory_space<vmem>>, %arg13: memref<1x32x128xf32, #tpu.memory_space<vmem>>, %arg14: memref<32x128xbf16, #tpu.memory_space<vmem>>, %arg15: memref<32x128xbf16, #tpu.memory_space<vmem>>, %arg16: memref<32x128xbf16, #tpu.memory_space<vmem>>) attributes {dimension_semantics = [#tpu.dimension_semantics<parallel>, #tpu.dimension_semantics<arbitrary>], iteration_bounds = array<i64: 2, 1>, scalar_prefetch = 0 : i64, scratch_operands = 3 : i64, tpu.core_type = #tpu.core_type<tc>, window_params = [{transform_indices = @transform_0, window_bounds = array<i64: 1, 32, 128>}, {transform_indices = @transform_1, window_bounds = array<i64: 1, 32, 128>}, {transform_indices = @transform_2, window_bounds = array<i64: 1, 32, 128>}, {pipeline_mode = #tpu.pipeline_mode<synchronous>, transform_indices = @transform_3, window_bounds = array<i64: 32, 32>}, {pipeline_mode = #tpu.pipeline_mode<synchronous>, transform_indices = @transform_4, window_bounds = array<i64: 32, 1>}, {pipeline_mode = #tpu.pipeline_mode<synchronous>, transform_indices = @transform_5, window_bounds = array<i64: 32, 32>}, {pipeline_mode = #tpu.pipeline_mode<synchronous>, transform_indices = @transform_6, window_bounds = array<i64: 32, 1>}, {pipeline_mode = #tpu.pipeline_mode<synchronous>, transform_indices = @transform_7, window_bounds = array<i64: 32, 32>}, {pipeline_mode = #tpu.pipeline_mode<synchronous>, transform_indices = @transform_8, window_bounds = array<i64: 32, 1>}, {pipeline_mode = #tpu.pipeline_mode<synchronous>, transform_indices = @transform_9, window_bounds = array<i64: 32, 32>}, {pipeline_mode = #tpu.pipeline_mode<synchronous>, transform_indices = @transform_10, window_bounds = array<i64: 32, 1>}, {transform_indices = @transform_11, window_bounds = array<i64: 1, 32, 128>}]} {
    %c0_i32 = arith.constant 0 : i32
    %0 = arith.cmpi eq, %arg1, %c0_i32 : i32
    %1 = arith.extui %0 : i1 to i32
    %c0_i32_0 = arith.constant 0 : i32
    %2 = arith.cmpi ne, %1, %c0_i32_0 : i32
    scf.if %2 {
      %c0_56 = arith.constant 0 : index
      %c0_57 = arith.constant 0 : index
      %106 = vector.load %arg7[%c0_56, %c0_57] : memref<32x32xbf16, #tpu.memory_space<vmem>>, vector<32x32xbf16>
      %c0_58 = arith.constant 0 : index
      %c0_59 = arith.constant 0 : index
      %c0_60 = arith.constant 0 : index
      %107 = vector.load %arg3[%c0_58, %c0_59, %c0_60] : memref<1x32x128xbf16, #tpu.memory_space<vmem>>, vector<1x32x128xbf16>
      %108 = vector.shape_cast %107 : vector<1x32x128xbf16> to vector<32x128xbf16>
      %cst_61 = arith.constant dense<0.000000e+00> : vector<32x128xf32>
      %109 = tpu.matmul %106, %108, %cst_61 {dimension_numbers = #tpu.dot_dimension_numbers<[1], [0], [0], [1], [0, 0, 1, 1], [], []>} : vector<32x32xbf16>, vector<32x128xbf16>, vector<32x128xf32> -> vector<32x128xf32>
      %c0_62 = arith.constant 0 : index
      %c0_63 = arith.constant 0 : index
      %110 = vector.load %arg8[%c0_62, %c0_63] : memref<32x1xf32, #tpu.memory_space<vmem>>, vector<32x1xf32>
      %111 = vector.broadcast %110 : vector<32x1xf32> to vector<32x128xf32>
      %112 = arith.addf %109, %111 : vector<32x128xf32>
      %c0_64 = arith.constant 0 : index
      %c0_65 = arith.constant 0 : index
      %113 = vector.load %arg9[%c0_64, %c0_65] : memref<32x32xbf16, #tpu.memory_space<vmem>>, vector<32x32xbf16>
      %c0_66 = arith.constant 0 : index
      %c0_67 = arith.constant 0 : index
      %c0_68 = arith.constant 0 : index
      %114 = vector.load %arg4[%c0_66, %c0_67, %c0_68] : memref<1x32x128xbf16, #tpu.memory_space<vmem>>, vector<1x32x128xbf16>
      %115 = vector.shape_cast %114 : vector<1x32x128xbf16> to vector<32x128xbf16>
      %cst_69 = arith.constant dense<0.000000e+00> : vector<32x128xf32>
      %116 = tpu.matmul %113, %115, %cst_69 {dimension_numbers = #tpu.dot_dimension_numbers<[1], [0], [0], [1], [0, 0, 1, 1], [], []>} : vector<32x32xbf16>, vector<32x128xbf16>, vector<32x128xf32> -> vector<32x128xf32>
      %c0_70 = arith.constant 0 : index
      %c0_71 = arith.constant 0 : index
      %117 = vector.load %arg10[%c0_70, %c0_71] : memref<32x1xf32, #tpu.memory_space<vmem>>, vector<32x1xf32>
      %118 = vector.broadcast %117 : vector<32x1xf32> to vector<32x128xf32>
      %119 = arith.addf %116, %118 : vector<32x128xf32>
      %120 = arith.truncf %112 : vector<32x128xf32> to vector<32x128xbf16>
      %c0_72 = arith.constant 0 : index
      %c0_73 = arith.constant 0 : index
      %121 = vector.load %arg14[%c0_72, %c0_73] : memref<32x128xbf16, #tpu.memory_space<vmem>>, vector<32x128xbf16>
      tpu.vector_store %arg14[%c0_72, %c0_73], %120 {strides = array<i32>} : memref<32x128xbf16, #tpu.memory_space<vmem>>, vector<32x128xbf16>,
      %122 = arith.truncf %119 : vector<32x128xf32> to vector<32x128xbf16>
      %c0_74 = arith.constant 0 : index
      %c0_75 = arith.constant 0 : index
      %123 = vector.load %arg15[%c0_74, %c0_75] : memref<32x128xbf16, #tpu.memory_space<vmem>>, vector<32x128xbf16>
      tpu.vector_store %arg15[%c0_74, %c0_75], %122 {strides = array<i32>} : memref<32x128xbf16, #tpu.memory_space<vmem>>, vector<32x128xbf16>,
    } else {
    }
    %c0 = arith.constant 0 : index
    %c0_1 = arith.constant 0 : index
    %3 = vector.load %arg5[%c0, %c0_1] : memref<32x32xbf16, #tpu.memory_space<vmem>>, vector<32x32xbf16>
    %c0_2 = arith.constant 0 : index
    %c0_3 = arith.constant 0 : index
    %c0_4 = arith.constant 0 : index
    %4 = vector.load %arg2[%c0_2, %c0_3, %c0_4] : memref<1x32x128xbf16, #tpu.memory_space<vmem>>, vector<1x32x128xbf16>
    %5 = vector.shape_cast %4 : vector<1x32x128xbf16> to vector<32x128xbf16>
    %cst = arith.constant dense<0.000000e+00> : vector<32x128xf32>
    %6 = tpu.matmul %3, %5, %cst {dimension_numbers = #tpu.dot_dimension_numbers<[1], [0], [0], [1], [0, 0, 1, 1], [], []>} : vector<32x32xbf16>, vector<32x128xbf16>, vector<32x128xf32> -> vector<32x128xf32>
    %c0_5 = arith.constant 0 : index
    %c0_6 = arith.constant 0 : index
    %7 = vector.load %arg6[%c0_5, %c0_6] : memref<32x1xf32, #tpu.memory_space<vmem>>, vector<32x1xf32>
    %8 = vector.broadcast %7 : vector<32x1xf32> to vector<32x128xf32>
    %9 = arith.addf %6, %8 : vector<32x128xf32>
    %10 = arith.truncf %9 : vector<32x128xf32> to vector<32x128xbf16>
    %11 = tpu.iota {dimensions = array<i32: 1>} : vector<1x128xi32>
    %c16_i32 = arith.constant 16 : i32
    %12 = vector.broadcast %c16_i32 : i32 to vector<1x128xi32>
    %13 = arith.cmpi slt, %11, %12 : vector<1x128xi32>
    %cst_7 = arith.constant 0.000000e+00 : f32
    %cst_8 = arith.constant -1.000000e+30 : f32
    %14 = vector.broadcast %cst_7 : f32 to vector<1x128xf32>
    %15 = vector.broadcast %cst_8 : f32 to vector<1x128xf32>
    %16 = arith.select %13, %14, %15 : vector<1x128xi1>, vector<1x128xf32>
    %17 = vector.extract_strided_slice %10 {offsets = [0, 0], sizes = [8, 128], strides = [1, 1]} : vector<32x128xbf16> to vector<8x128xbf16>
    %c0_9 = arith.constant 0 : index
    %c0_10 = arith.constant 0 : index
    %18 = vector.load %arg14[%c0_9, %c0_10] : memref<32x128xbf16, #tpu.memory_space<vmem>>, vector<8x128xbf16>
    %c0_11 = arith.constant 0 : index
    %c0_12 = arith.constant 0 : index
    %19 = vector.load %arg15[%c0_11, %c0_12] : memref<32x128xbf16, #tpu.memory_space<vmem>>, vector<8x128xbf16>
    %cst_13 = arith.constant dense<0.000000e+00> : vector<128x128xf32>
    %20 = tpu.matmul %17, %18, %cst_13 {dimension_numbers = #tpu.dot_dimension_numbers<[0], [0], [1], [1], [0, 1, 1, 1], [], []>} : vector<8x128xbf16>, vector<8x128xbf16>, vector<128x128xf32> -> vector<128x128xf32>
    %21 = vector.broadcast %16 : vector<1x128xf32> to vector<128x128xf32>
    %22 = arith.addf %20, %21 : vector<128x128xf32>
    %cst_14 = arith.constant dense<0xFF800000> : vector<128xf32>
    %23 = vector.multi_reduction <maximumf>, %22, %cst_14 [1] : vector<128x128xf32> to vector<128xf32>
    %24 = vector.shape_cast %23 : vector<128xf32> to vector<128x1xf32>
    %25 = vector.broadcast %24 : vector<128x1xf32> to vector<128x128xf32>
    %26 = arith.subf %22, %25 : vector<128x128xf32>
    %27 = math.exp %26 : vector<128x128xf32>
    %cst_15 = arith.constant dense<0.000000e+00> : vector<128xf32>
    %28 = vector.multi_reduction <add>, %27, %cst_15 [1] : vector<128x128xf32> to vector<128xf32>
    %29 = vector.shape_cast %28 : vector<128xf32> to vector<128x1xf32>
    %30 = tpu.reciprocal %29 {approx = true} : vector<128x1xf32> -> vector<128x1xf32>
    %31 = vector.broadcast %30 : vector<128x1xf32> to vector<128x128xf32>
    %32 = arith.mulf %27, %31 : vector<128x128xf32>
    %33 = arith.truncf %32 : vector<128x128xf32> to vector<128x128xbf16>
    %cst_16 = arith.constant dense<0.000000e+00> : vector<8x128xf32>
    %34 = tpu.matmul %19, %33, %cst_16 {dimension_numbers = #tpu.dot_dimension_numbers<[1], [1], [0], [0], [0, 0, 1, 0], [], []>} : vector<8x128xbf16>, vector<128x128xbf16>, vector<8x128xf32> -> vector<8x128xf32>
    %35 = arith.truncf %34 : vector<8x128xf32> to vector<8x128xbf16>
    %c0_17 = arith.constant 0 : index
    %c0_18 = arith.constant 0 : index
    %36 = vector.load %arg16[%c0_17, %c0_18] : memref<32x128xbf16, #tpu.memory_space<vmem>>, vector<8x128xbf16>
    tpu.vector_store %arg16[%c0_17, %c0_18], %35 {strides = array<i32>} : memref<32x128xbf16, #tpu.memory_space<vmem>>, vector<8x128xbf16>,
    %37 = vector.extract_strided_slice %10 {offsets = [8, 0], sizes = [8, 128], strides = [1, 1]} : vector<32x128xbf16> to vector<8x128xbf16>
    %c8 = arith.constant 8 : index
    %c0_19 = arith.constant 0 : index
    %38 = vector.load %arg14[%c8, %c0_19] : memref<32x128xbf16, #tpu.memory_space<vmem>>, vector<8x128xbf16>
    %c8_20 = arith.constant 8 : index
    %c0_21 = arith.constant 0 : index
    %39 = vector.load %arg15[%c8_20, %c0_21] : memref<32x128xbf16, #tpu.memory_space<vmem>>, vector<8x128xbf16>
    %cst_22 = arith.constant dense<0.000000e+00> : vector<128x128xf32>
    %40 = tpu.matmul %37, %38, %cst_22 {dimension_numbers = #tpu.dot_dimension_numbers<[0], [0], [1], [1], [0, 1, 1, 1], [], []>} : vector<8x128xbf16>, vector<8x128xbf16>, vector<128x128xf32> -> vector<128x128xf32>
    %41 = vector.broadcast %16 : vector<1x128xf32> to vector<128x128xf32>
    %42 = arith.addf %40, %41 : vector<128x128xf32>
    %cst_23 = arith.constant dense<0xFF800000> : vector<128xf32>
    %43 = vector.multi_reduction <maximumf>, %42, %cst_23 [1] : vector<128x128xf32> to vector<128xf32>
    %44 = vector.shape_cast %43 : vector<128xf32> to vector<128x1xf32>
    %45 = vector.broadcast %44 : vector<128x1xf32> to vector<128x128xf32>
    %46 = arith.subf %42, %45 : vector<128x128xf32>
    %47 = math.exp %46 : vector<128x128xf32>
    %cst_24 = arith.constant dense<0.000000e+00> : vector<128xf32>
    %48 = vector.multi_reduction <add>, %47, %cst_24 [1] : vector<128x128xf32> to vector<128xf32>
    %49 = vector.shape_cast %48 : vector<128xf32> to vector<128x1xf32>
    %50 = tpu.reciprocal %49 {approx = true} : vector<128x1xf32> -> vector<128x1xf32>
    %51 = vector.broadcast %50 : vector<128x1xf32> to vector<128x128xf32>
    %52 = arith.mulf %47, %51 : vector<128x128xf32>
    %53 = arith.truncf %52 : vector<128x128xf32> to vector<128x128xbf16>
    %cst_25 = arith.constant dense<0.000000e+00> : vector<8x128xf32>
    %54 = tpu.matmul %39, %53, %cst_25 {dimension_numbers = #tpu.dot_dimension_numbers<[1], [1], [0], [0], [0, 0, 1, 0], [], []>} : vector<8x128xbf16>, vector<128x128xbf16>, vector<8x128xf32> -> vector<8x128xf32>
    %55 = arith.truncf %54 : vector<8x128xf32> to vector<8x128xbf16>
    %c8_26 = arith.constant 8 : index
    %c0_27 = arith.constant 0 : index
    %56 = vector.load %arg16[%c8_26, %c0_27] : memref<32x128xbf16, #tpu.memory_space<vmem>>, vector<8x128xbf16>
    tpu.vector_store %arg16[%c8_26, %c0_27], %55 {strides = array<i32>} : memref<32x128xbf16, #tpu.memory_space<vmem>>, vector<8x128xbf16>,
    %57 = vector.extract_strided_slice %10 {offsets = [16, 0], sizes = [8, 128], strides = [1, 1]} : vector<32x128xbf16> to vector<8x128xbf16>
    %c16 = arith.constant 16 : index
    %c0_28 = arith.constant 0 : index
    %58 = vector.load %arg14[%c16, %c0_28] : memref<32x128xbf16, #tpu.memory_space<vmem>>, vector<8x128xbf16>
    %c16_29 = arith.constant 16 : index
    %c0_30 = arith.constant 0 : index
    %59 = vector.load %arg15[%c16_29, %c0_30] : memref<32x128xbf16, #tpu.memory_space<vmem>>, vector<8x128xbf16>
    %cst_31 = arith.constant dense<0.000000e+00> : vector<128x128xf32>
    %60 = tpu.matmul %57, %58, %cst_31 {dimension_numbers = #tpu.dot_dimension_numbers<[0], [0], [1], [1], [0, 1, 1, 1], [], []>} : vector<8x128xbf16>, vector<8x128xbf16>, vector<128x128xf32> -> vector<128x128xf32>
    %61 = vector.broadcast %16 : vector<1x128xf32> to vector<128x128xf32>
    %62 = arith.addf %60, %61 : vector<128x128xf32>
    %cst_32 = arith.constant dense<0xFF800000> : vector<128xf32>
    %63 = vector.multi_reduction <maximumf>, %62, %cst_32 [1] : vector<128x128xf32> to vector<128xf32>
    %64 = vector.shape_cast %63 : vector<128xf32> to vector<128x1xf32>
    %65 = vector.broadcast %64 : vector<128x1xf32> to vector<128x128xf32>
    %66 = arith.subf %62, %65 : vector<128x128xf32>
    %67 = math.exp %66 : vector<128x128xf32>
    %cst_33 = arith.constant dense<0.000000e+00> : vector<128xf32>
    %68 = vector.multi_reduction <add>, %67, %cst_33 [1] : vector<128x128xf32> to vector<128xf32>
    %69 = vector.shape_cast %68 : vector<128xf32> to vector<128x1xf32>
    %70 = tpu.reciprocal %69 {approx = true} : vector<128x1xf32> -> vector<128x1xf32>
    %71 = vector.broadcast %70 : vector<128x1xf32> to vector<128x128xf32>
    %72 = arith.mulf %67, %71 : vector<128x128xf32>
    %73 = arith.truncf %72 : vector<128x128xf32> to vector<128x128xbf16>
    %cst_34 = arith.constant dense<0.000000e+00> : vector<8x128xf32>
    %74 = tpu.matmul %59, %73, %cst_34 {dimension_numbers = #tpu.dot_dimension_numbers<[1], [1], [0], [0], [0, 0, 1, 0], [], []>} : vector<8x128xbf16>, vector<128x128xbf16>, vector<8x128xf32> -> vector<8x128xf32>
    %75 = arith.truncf %74 : vector<8x128xf32> to vector<8x128xbf16>
    %c16_35 = arith.constant 16 : index
    %c0_36 = arith.constant 0 : index
    %76 = vector.load %arg16[%c16_35, %c0_36] : memref<32x128xbf16, #tpu.memory_space<vmem>>, vector<8x128xbf16>
    tpu.vector_store %arg16[%c16_35, %c0_36], %75 {strides = array<i32>} : memref<32x128xbf16, #tpu.memory_space<vmem>>, vector<8x128xbf16>,
    %77 = vector.extract_strided_slice %10 {offsets = [24, 0], sizes = [8, 128], strides = [1, 1]} : vector<32x128xbf16> to vector<8x128xbf16>
    %c24 = arith.constant 24 : index
    %c0_37 = arith.constant 0 : index
    %78 = vector.load %arg14[%c24, %c0_37] : memref<32x128xbf16, #tpu.memory_space<vmem>>, vector<8x128xbf16>
    %c24_38 = arith.constant 24 : index
    %c0_39 = arith.constant 0 : index
    %79 = vector.load %arg15[%c24_38, %c0_39] : memref<32x128xbf16, #tpu.memory_space<vmem>>, vector<8x128xbf16>
    %cst_40 = arith.constant dense<0.000000e+00> : vector<128x128xf32>
    %80 = tpu.matmul %77, %78, %cst_40 {dimension_numbers = #tpu.dot_dimension_numbers<[0], [0], [1], [1], [0, 1, 1, 1], [], []>} : vector<8x128xbf16>, vector<8x128xbf16>, vector<128x128xf32> -> vector<128x128xf32>
    %81 = vector.broadcast %16 : vector<1x128xf32> to vector<128x128xf32>
    %82 = arith.addf %80, %81 : vector<128x128xf32>
    %cst_41 = arith.constant dense<0xFF800000> : vector<128xf32>
    %83 = vector.multi_reduction <maximumf>, %82, %cst_41 [1] : vector<128x128xf32> to vector<128xf32>
    %84 = vector.shape_cast %83 : vector<128xf32> to vector<128x1xf32>
    %85 = vector.broadcast %84 : vector<128x1xf32> to vector<128x128xf32>
    %86 = arith.subf %82, %85 : vector<128x128xf32>
    %87 = math.exp %86 : vector<128x128xf32>
    %cst_42 = arith.constant dense<0.000000e+00> : vector<128xf32>
    %88 = vector.multi_reduction <add>, %87, %cst_42 [1] : vector<128x128xf32> to vector<128xf32>
    %89 = vector.shape_cast %88 : vector<128xf32> to vector<128x1xf32>
    %90 = tpu.reciprocal %89 {approx = true} : vector<128x1xf32> -> vector<128x1xf32>
    %91 = vector.broadcast %90 : vector<128x1xf32> to vector<128x128xf32>
    %92 = arith.mulf %87, %91 : vector<128x128xf32>
    %93 = arith.truncf %92 : vector<128x128xf32> to vector<128x128xbf16>
    %cst_43 = arith.constant dense<0.000000e+00> : vector<8x128xf32>
    %94 = tpu.matmul %79, %93, %cst_43 {dimension_numbers = #tpu.dot_dimension_numbers<[1], [1], [0], [0], [0, 0, 1, 0], [], []>} : vector<8x128xbf16>, vector<128x128xbf16>, vector<8x128xf32> -> vector<8x128xf32>
    %95 = arith.truncf %94 : vector<8x128xf32> to vector<8x128xbf16>
    %c24_44 = arith.constant 24 : index
    %c0_45 = arith.constant 0 : index
    %96 = vector.load %arg16[%c24_44, %c0_45] : memref<32x128xbf16, #tpu.memory_space<vmem>>, vector<8x128xbf16>
    tpu.vector_store %arg16[%c24_44, %c0_45], %95 {strides = array<i32>} : memref<32x128xbf16, #tpu.memory_space<vmem>>, vector<8x128xbf16>,
    %c0_46 = arith.constant 0 : index
    %c0_47 = arith.constant 0 : index
    %97 = vector.load %arg11[%c0_46, %c0_47] : memref<32x32xbf16, #tpu.memory_space<vmem>>, vector<32x32xbf16>
    %c0_48 = arith.constant 0 : index
    %c0_49 = arith.constant 0 : index
    %98 = vector.load %arg16[%c0_48, %c0_49] : memref<32x128xbf16, #tpu.memory_space<vmem>>, vector<32x128xbf16>
    %cst_50 = arith.constant dense<0.000000e+00> : vector<32x128xf32>
    %99 = tpu.matmul %97, %98, %cst_50 {dimension_numbers = #tpu.dot_dimension_numbers<[1], [0], [0], [1], [0, 0, 1, 1], [], []>} : vector<32x32xbf16>, vector<32x128xbf16>, vector<32x128xf32> -> vector<32x128xf32>
    %c0_51 = arith.constant 0 : index
    %c0_52 = arith.constant 0 : index
    %100 = vector.load %arg12[%c0_51, %c0_52] : memref<32x1xf32, #tpu.memory_space<vmem>>, vector<32x1xf32>
    %101 = vector.broadcast %100 : vector<32x1xf32> to vector<32x128xf32>
    %102 = arith.addf %99, %101 : vector<32x128xf32>
    %c0_53 = arith.constant 0 : index
    %c0_54 = arith.constant 0 : index
    %c0_55 = arith.constant 0 : index
    %103 = vector.load %arg13[%c0_53, %c0_54, %c0_55] : memref<1x32x128xf32, #tpu.memory_space<vmem>>, vector<1x32x128xf32>
    %104 = vector.shape_cast %103 : vector<1x32x128xf32> to vector<32x128xf32>
    %105 = vector.shape_cast %102 : vector<32x128xf32> to vector<1x32x128xf32>
    tpu.vector_store %arg13[%c0_53, %c0_54, %c0_55], %105 {strides = array<i32>} : memref<1x32x128xf32, #tpu.memory_space<vmem>>, vector<1x32x128xf32>,
    return
  }
  func.func @transform_0(%arg0: i32, %arg1: i32) -> (i32, i32, i32) {
    %c0_i32 = arith.constant 0 : i32
    %c0_i32_0 = arith.constant 0 : i32
    return %arg0, %c0_i32, %arg1 : i32, i32, i32
  }
  func.func @transform_1(%arg0: i32, %arg1: i32) -> (i32, i32, i32) {
    %c0_i32 = arith.constant 0 : i32
    %c0_i32_0 = arith.constant 0 : i32
    %c0_i32_1 = arith.constant 0 : i32
    return %arg0, %c0_i32, %c0_i32_0 : i32, i32, i32
  }
  func.func @transform_2(%arg0: i32, %arg1: i32) -> (i32, i32, i32) {
    %c0_i32 = arith.constant 0 : i32
    %c0_i32_0 = arith.constant 0 : i32
    %c0_i32_1 = arith.constant 0 : i32
    return %arg0, %c0_i32, %c0_i32_0 : i32, i32, i32
  }
  func.func @transform_3(%arg0: i32, %arg1: i32) -> (i32, i32) {
    %c0_i32 = arith.constant 0 : i32
    %c0_i32_0 = arith.constant 0 : i32
    %c0_i32_1 = arith.constant 0 : i32
    return %c0_i32, %c0_i32_0 : i32, i32
  }
  func.func @transform_4(%arg0: i32, %arg1: i32) -> (i32, i32) {
    %c0_i32 = arith.constant 0 : i32
    %c0_i32_0 = arith.constant 0 : i32
    %c0_i32_1 = arith.constant 0 : i32
    return %c0_i32, %c0_i32_0 : i32, i32
  }
  func.func @transform_5(%arg0: i32, %arg1: i32) -> (i32, i32) {
    %c0_i32 = arith.constant 0 : i32
    %c0_i32_0 = arith.constant 0 : i32
    %c0_i32_1 = arith.constant 0 : i32
    return %c0_i32, %c0_i32_0 : i32, i32
  }
  func.func @transform_6(%arg0: i32, %arg1: i32) -> (i32, i32) {
    %c0_i32 = arith.constant 0 : i32
    %c0_i32_0 = arith.constant 0 : i32
    %c0_i32_1 = arith.constant 0 : i32
    return %c0_i32, %c0_i32_0 : i32, i32
  }
  func.func @transform_7(%arg0: i32, %arg1: i32) -> (i32, i32) {
    %c0_i32 = arith.constant 0 : i32
    %c0_i32_0 = arith.constant 0 : i32
    %c0_i32_1 = arith.constant 0 : i32
    return %c0_i32, %c0_i32_0 : i32, i32
  }
  func.func @transform_8(%arg0: i32, %arg1: i32) -> (i32, i32) {
    %c0_i32 = arith.constant 0 : i32
    %c0_i32_0 = arith.constant 0 : i32
    %c0_i32_1 = arith.constant 0 : i32
    return %c0_i32, %c0_i32_0 : i32, i32
  }
  func.func @transform_9(%arg0: i32, %arg1: i32) -> (i32, i32) {
    %c0_i32 = arith.constant 0 : i32
    %c0_i32_0 = arith.constant 0 : i32
    %c0_i32_1 = arith.constant 0 : i32
    return %c0_i32, %c0_i32_0 : i32, i32
  }
  func.func @transform_10(%arg0: i32, %arg1: i32) -> (i32, i32) {
    %c0_i32 = arith.constant 0 : i32
    %c0_i32_0 = arith.constant 0 : i32
    %c0_i32_1 = arith.constant 0 : i32
    return %c0_i32, %c0_i32_0 : i32, i32
  }
  func.func @transform_11(%arg0: i32, %arg1: i32) -> (i32, i32, i32) {
    %c0_i32 = arith.constant 0 : i32
    %c0_i32_0 = arith.constant 0 : i32
    return %arg0, %c0_i32, %arg1 : i32, i32, i32
  }
}

</mosaic_0001>

<llo_original>
// kernel: tpu_custom_call.1
$region0: #{tpu_custom_call.1}
  #allocation0 [shape = 'u32[]', space=smem, size = 0x4, offset = 0x4, fixed_abs, tag = 'smem constant byte address 0x4 - core index']
  #allocation1 [shape = 'u32[144,128]{1,0:T(1,128)}', space=vmem, size = 0x12000, scoped, tag = 'internal scratch']
  #allocation2 [shape = 'bf16[32,128]{1,0:T(8,128)(2,1)}', space=vmem, size = 0x2000, scoped, tag = 'scratch operand']
  #allocation3 [shape = 'bf16[32,128]{1,0:T(8,128)(2,1)}', space=vmem, size = 0x2000, scoped, tag = 'scratch operand']
  #allocation4 [shape = 'bf16[32,128]{1,0:T(8,128)(2,1)}', space=vmem, size = 0x2000, scoped, tag = 'scratch operand']
  %s0 = inlined_call_operand.vmem [shape: bf16[2,32,128], index: 0, kind: input, shape index: {}]
  %s1 = inlined_call_operand.vmem [shape: bf16[2,32,128], index: 1, kind: input, shape index: {}]
  %s2 = inlined_call_operand.vmem [shape: bf16[2,32,128], index: 2, kind: input, shape index: {}]
  %s3 = inlined_call_operand.vmem [shape: bf16[32,32], index: 3, kind: input, shape index: {}]
  %s4 = inlined_call_operand.vmem [shape: f32[32,1], index: 4, kind: input, shape index: {}]
  %s5 = inlined_call_operand.vmem [shape: bf16[32,32], index: 5, kind: input, shape index: {}]
  %s6 = inlined_call_operand.vmem [shape: f32[32,1], index: 6, kind: input, shape index: {}]
  %s7 = inlined_call_operand.vmem [shape: bf16[32,32], index: 7, kind: input, shape index: {}]
  %s8 = inlined_call_operand.vmem [shape: f32[32,1], index: 8, kind: input, shape index: {}]
  %s9 = inlined_call_operand.hbm [shape: bf16[32,32], index: 9, kind: input, shape index: {}]
  %s10 = inlined_call_operand.vmem [shape: f32[32,1], index: 10, kind: input, shape index: {}]
  %s11 = inlined_call_operand.hbm [shape: f32[2,32,128], index: 11, kind: output, shape index: {}]
  %s12 = sld [smem:[#allocation0]]
  $region85: #{tpu_custom_call.1} parent=0
    _
  %s14 = ssub.s32 1, %s12
  %s15 = scalar_select 0, %s14, %s12
  $region1: #{tpu_custom_call.1} parent=0
    #allocation5 [shape = 'u8[8192]{0}', space=vmem, size = 0x2000, scoped, tag = 'input window, operand 9, single buffered']
    #allocation6 [shape = 's32[2]{0}', space=sflag, size = 0x8, scoped, tag = 'scoped memory for tpu_custom_call.1']
    #allocation7 [shape = 's32[2]{0}', space=sflag, size = 0x8, scoped, tag = 'scoped memory for tpu_custom_call.1']
    #allocation8 [shape = 'u8[32768]{0}', space=vmem, size = 0x8000, scoped, tag = 'output window, operand 0']
    %16 = vsyncpa [#allocation6], 0
    %17 = vsyncpa [#allocation7], 0
    %s18 = scalar_lea.sflag [#allocation7], 1
    %19 = vsyncpa %s18, 0
    loop: start=0, step=1, limit=4
    $region2: #{tpu_custom_call.1} parent=1 // loop_pre_header
      _
    $region3: #{tpu_custom_call.1} parent=1 // loop_header
      %s21 = sphi 0, %s25
      %p22 = scmp.ge.s32.totalorder %s21, 4
      %s28 = sphi 0, %s40
      %s29 = sphi 0, %s36
      %s30 = sphi 0, %s28
      %s31 = sphi 0, %s29
      %s32 = sphi 0, %s30
      %s33 = sphi 0, %s31
      %s45 = sphi 0, %s47
      %s48 = sphi 0, %s45
      %s49 = sphi 0, %s48
      %s65 = sphi 0, %s49
      %s71 = sphi 0, %s73
      %s74 = sphi 0, %s71
      %s75 = sphi 0, %s74
      %s91 = sphi 0, %s75
      %s97 = sphi 0, %s99
      %s100 = sphi 0, %s97
      %s101 = sphi 0, %s100
      %s117 = sphi 0, %s101
      %s121 = sphi 0, %s121
      %s123 = sphi 0, %s121
      %s124 = sphi 0, %s123
      %s138 = sphi 0, %s124
      %s142 = sphi 0, %s142
      %s144 = sphi 0, %s142
      %s145 = sphi 0, %s144
      %s159 = sphi 0, %s145
      %s163 = sphi 0, %s163
      %s165 = sphi 0, %s163
      %s166 = sphi 0, %s165
      %s180 = sphi 0, %s166
      %s184 = sphi 0, %s184
      %s186 = sphi 0, %s184
      %s187 = sphi 0, %s186
      %s201 = sphi 0, %s187
      %s205 = sphi 0, %s205
      %s207 = sphi 0, %s205
      %s208 = sphi 0, %s207
      %s222 = sphi 0, %s208
      %s226 = sphi 0, %s226
      %s228 = sphi 0, %s226
      %s229 = sphi 0, %s228
      %s243 = sphi 0, %s229
      %s247 = sphi 0, %s247
      %s249 = sphi 0, %s247
      %s250 = sphi 0, %s249
      %s264 = sphi 0, %s250
      %s268 = sphi 0, %s268
      %s270 = sphi 0, %s268
      %s271 = sphi 0, %s270
      %s285 = sphi 0, %s271
      %s293 = sphi 0, %s295
      %s296 = sphi 0, %s293
      %s297 = sphi 0, %s296
      %s313 = sphi 0, %s297
    $region4: #{tpu_custom_call.1} parent=1 // loop_header_branch
      %24 = sbr.rel (%p22) target = $region8
    $region5: #{tpu_custom_call.1} parent=1 // loop_body
      %s26 = ssub.s32 %s21, 1
      %s27 = ssub.s32 %s21, 2
      %s34 = sadd.s32 1, %s29
      %p35 = scmp.ge.s32.totalorder %s34, 1
      %s36 = scalar_select %p35, 0, %s34
      %s37 = sadd.s32 1, %s28
      %s38 = scalar_select %p35, %s37, %s28
      %p39 = scmp.ge.s32.totalorder %s38, 2
      %s40 = scalar_select %p39, 0, %s38
      %s41 = ssub.s32 %s28, %s40
      %s42 = ssub.s32 %s29, %s36
      %s43 = sor.u32 %s41, %s42
      %p44 = scmp.eq.s32.totalorder %s43, 0
      %s46 = sadd.s32 %s45, 1
      %s47 = scalar_select %p44, %s45, %s46
      %p50 = pneg %p44
      %p51 = scmp.eq.s32.totalorder %s21, 1
      %p52 = por %p50, %p51
      %p53 = scmp.ne.s32.totalorder %s45, %s48
      %p54 = scmp.eq.s32.totalorder %s21, 0
      %p55 = por %p53, %p54
      %p56 = scmp.ne.s32.totalorder %s45, %s48
      %p57 = scmp.eq.s32.totalorder %s26, 1
      %p58 = por %p56, %p57
      %p59 = scmp.ne.s32.totalorder %s48, %s49
      %p60 = scmp.eq.s32.totalorder %s26, 0
      %p61 = por %p59, %p60
      %p62 = scmp.ne.s32.totalorder %s48, %s49
      %p63 = scmp.eq.s32.totalorder %s27, 1
      %p64 = por %p62, %p63
      %p66 = scmp.ne.s32.totalorder %s49, %s65
      %p67 = scmp.eq.s32.totalorder %s27, 0
      %p68 = por %p66, %p67
      %s69 = ssub.s32 %s28, %s40
      %p70 = scmp.eq.s32.totalorder %s69, 0
      %s72 = sadd.s32 %s71, 1
      %s73 = scalar_select %p70, %s71, %s72
      %p76 = pneg %p70
      %p77 = scmp.eq.s32.totalorder %s21, 1
      %p78 = por %p76, %p77
      %p79 = scmp.ne.s32.totalorder %s71, %s74
      %p80 = scmp.eq.s32.totalorder %s21, 0
      %p81 = por %p79, %p80
      %p82 = scmp.ne.s32.totalorder %s71, %s74
      %p83 = scmp.eq.s32.totalorder %s26, 1
      %p84 = por %p82, %p83
      %p85 = scmp.ne.s32.totalorder %s74, %s75
      %p86 = scmp.eq.s32.totalorder %s26, 0
      %p87 = por %p85, %p86
      %p88 = scmp.ne.s32.totalorder %s74, %s75
      %p89 = scmp.eq.s32.totalorder %s27, 1
      %p90 = por %p88, %p89
      %p92 = scmp.ne.s32.totalorder %s75, %s91
      %p93 = scmp.eq.s32.totalorder %s27, 0
      %p94 = por %p92, %p93
      %s95 = ssub.s32 %s28, %s40
      %p96 = scmp.eq.s32.totalorder %s95, 0
      %s98 = sadd.s32 %s97, 1
      %s99 = scalar_select %p96, %s97, %s98
      %p102 = pneg %p96
      %p103 = scmp.eq.s32.totalorder %s21, 1
      %p104 = por %p102, %p103
      %p105 = scmp.ne.s32.totalorder %s97, %s100
      %p106 = scmp.eq.s32.totalorder %s21, 0
      %p107 = por %p105, %p106
      %p108 = scmp.ne.s32.totalorder %s97, %s100
      %p109 = scmp.eq.s32.totalorder %s26, 1
      %p110 = por %p108, %p109
      %p111 = scmp.ne.s32.totalorder %s100, %s101
      %p112 = scmp.eq.s32.totalorder %s26, 0
      %p113 = por %p111, %p112
      %p114 = scmp.ne.s32.totalorder %s100, %s101
      %p115 = scmp.eq.s32.totalorder %s27, 1
      %p116 = por %p114, %p115
      %p118 = scmp.ne.s32.totalorder %s101, %s117
      %p119 = scmp.eq.s32.totalorder %s27, 0
      %p120 = por %p118, %p119
      %s122 = sadd.s32 %s121, 1
      %p125 = scmp.eq.s32.totalorder %s21, 1
      %p126 = scmp.ne.s32.totalorder %s121, %s123
      %p127 = scmp.eq.s32.totalorder %s21, 0
      %p128 = por %p126, %p127
      %p129 = scmp.ne.s32.totalorder %s121, %s123
      %p130 = scmp.eq.s32.totalorder %s26, 1
      %p131 = por %p129, %p130
      %p132 = scmp.ne.s32.totalorder %s123, %s124
      %p133 = scmp.eq.s32.totalorder %s26, 0
      %p134 = por %p132, %p133
      %p135 = scmp.ne.s32.totalorder %s123, %s124
      %p136 = scmp.eq.s32.totalorder %s27, 1
      %p137 = por %p135, %p136
      %p139 = scmp.ne.s32.totalorder %s124, %s138
      %p140 = scmp.eq.s32.totalorder %s27, 0
      %p141 = por %p139, %p140
      %s143 = sadd.s32 %s142, 1
      %p146 = scmp.eq.s32.totalorder %s21, 1
      %p147 = scmp.ne.s32.totalorder %s142, %s144
      %p148 = scmp.eq.s32.totalorder %s21, 0
      %p149 = por %p147, %p148
      %p150 = scmp.ne.s32.totalorder %s142, %s144
      %p151 = scmp.eq.s32.totalorder %s26, 1
      %p152 = por %p150, %p151
      %p153 = scmp.ne.s32.totalorder %s144, %s145
      %p154 = scmp.eq.s32.totalorder %s26, 0
      %p155 = por %p153, %p154
      %p156 = scmp.ne.s32.totalorder %s144, %s145
      %p157 = scmp.eq.s32.totalorder %s27, 1
      %p158 = por %p156, %p157
      %p160 = scmp.ne.s32.totalorder %s145, %s159
      %p161 = scmp.eq.s32.totalorder %s27, 0
      %p162 = por %p160, %p161
      %s164 = sadd.s32 %s163, 1
      %p167 = scmp.eq.s32.totalorder %s21, 1
      %p168 = scmp.ne.s32.totalorder %s163, %s165
      %p169 = scmp.eq.s32.totalorder %s21, 0
      %p170 = por %p168, %p169
      %p171 = scmp.ne.s32.totalorder %s163, %s165
      %p172 = scmp.eq.s32.totalorder %s26, 1
      %p173 = por %p171, %p172
      %p174 = scmp.ne.s32.totalorder %s165, %s166
      %p175 = scmp.eq.s32.totalorder %s26, 0
      %p176 = por %p174, %p175
      %p177 = scmp.ne.s32.totalorder %s165, %s166
      %p178 = scmp.eq.s32.totalorder %s27, 1
      %p179 = por %p177, %p178
      %p181 = scmp.ne.s32.totalorder %s166, %s180
      %p182 = scmp.eq.s32.totalorder %s27, 0
      %p183 = por %p181, %p182
      %s185 = sadd.s32 %s184, 1
      %p188 = scmp.eq.s32.totalorder %s21, 1
      %p189 = scmp.ne.s32.totalorder %s184, %s186
      %p190 = scmp.eq.s32.totalorder %s21, 0
      %p191 = por %p189, %p190
      %p192 = scmp.ne.s32.totalorder %s184, %s186
      %p193 = scmp.eq.s32.totalorder %s26, 1
      %p194 = por %p192, %p193
      %p195 = scmp.ne.s32.totalorder %s186, %s187
      %p196 = scmp.eq.s32.totalorder %s26, 0
      %p197 = por %p195, %p196
      %p198 = scmp.ne.s32.totalorder %s186, %s187
      %p199 = scmp.eq.s32.totalorder %s27, 1
      %p200 = por %p198, %p199
      %p202 = scmp.ne.s32.totalorder %s187, %s201
      %p203 = scmp.eq.s32.totalorder %s27, 0
      %p204 = por %p202, %p203
      %s206 = sadd.s32 %s205, 1
      %p209 = scmp.eq.s32.totalorder %s21, 1
      %p210 = scmp.ne.s32.totalorder %s205, %s207
      %p211 = scmp.eq.s32.totalorder %s21, 0
      %p212 = por %p210, %p211
      %p213 = scmp.ne.s32.totalorder %s205, %s207
      %p214 = scmp.eq.s32.totalorder %s26, 1
      %p215 = por %p213, %p214
      %p216 = scmp.ne.s32.totalorder %s207, %s208
      %p217 = scmp.eq.s32.totalorder %s26, 0
      %p218 = por %p216, %p217
      %p219 = scmp.ne.s32.totalorder %s207, %s208
      %p220 = scmp.eq.s32.totalorder %s27, 1
      %p221 = por %p219, %p220
      %p223 = scmp.ne.s32.totalorder %s208, %s222
      %p224 = scmp.eq.s32.totalorder %s27, 0
      %p225 = por %p223, %p224
      %s227 = sadd.s32 %s226, 1
      %p230 = scmp.eq.s32.totalorder %s21, 1
      %p231 = scmp.ne.s32.totalorder %s226, %s228
      %p232 = scmp.eq.s32.totalorder %s21, 0
      %p233 = por %p231, %p232
      %p234 = scmp.ne.s32.totalorder %s226, %s228
      %p235 = scmp.eq.s32.totalorder %s26, 1
      %p236 = por %p234, %p235
      %p237 = scmp.ne.s32.totalorder %s228, %s229
      %p238 = scmp.eq.s32.totalorder %s26, 0
      %p239 = por %p237, %p238
      %p240 = scmp.ne.s32.totalorder %s228, %s229
      %p241 = scmp.eq.s32.totalorder %s27, 1
      %p242 = por %p240, %p241
      %p244 = scmp.ne.s32.totalorder %s229, %s243
      %p245 = scmp.eq.s32.totalorder %s27, 0
      %p246 = por %p244, %p245
      %s248 = sadd.s32 %s247, 1
      %p251 = scmp.eq.s32.totalorder %s21, 1
      %p252 = scmp.ne.s32.totalorder %s247, %s249
      %p253 = scmp.eq.s32.totalorder %s21, 0
      %p254 = por %p252, %p253
      %p255 = scmp.ne.s32.totalorder %s247, %s249
      %p256 = scmp.eq.s32.totalorder %s26, 1
      %p257 = por %p255, %p256
      %p258 = scmp.ne.s32.totalorder %s249, %s250
      %p259 = scmp.eq.s32.totalorder %s26, 0
      %p260 = por %p258, %p259
      %p261 = scmp.ne.s32.totalorder %s249, %s250
      %p262 = scmp.eq.s32.totalorder %s27, 1
      %p263 = por %p261, %p262
      %p265 = scmp.ne.s32.totalorder %s250, %s264
      %p266 = scmp.eq.s32.totalorder %s27, 0
      %p267 = por %p265, %p266
      %s269 = sadd.s32 %s268, 1
      %p272 = scmp.eq.s32.totalorder %s21, 1
      %p273 = scmp.ne.s32.totalorder %s268, %s270
      %p274 = scmp.eq.s32.totalorder %s21, 0
      %p275 = por %p273, %p274
      %p276 = scmp.ne.s32.totalorder %s268, %s270
      %p277 = scmp.eq.s32.totalorder %s26, 1
      %p278 = por %p276, %p277
      %p279 = scmp.ne.s32.totalorder %s270, %s271
      %p280 = scmp.eq.s32.totalorder %s26, 0
      %p281 = por %p279, %p280
      %p282 = scmp.ne.s32.totalorder %s270, %s271
      %p283 = scmp.eq.s32.totalorder %s27, 1
      %p284 = por %p282, %p283
      %p286 = scmp.ne.s32.totalorder %s271, %s285
      %p287 = scmp.eq.s32.totalorder %s27, 0
      %p288 = por %p286, %p287
      %s289 = ssub.s32 %s28, %s40
      %s290 = ssub.s32 %s29, %s36
      %s291 = sor.u32 %s289, %s290
      %p292 = scmp.eq.s32.totalorder %s291, 0
      %s294 = sadd.s32 %s293, 1
      %s295 = scalar_select %p292, %s293, %s294
      %p298 = pneg %p292
      %p299 = scmp.eq.s32.totalorder %s21, 1
      %p300 = por %p298, %p299
      %p301 = scmp.ne.s32.totalorder %s293, %s296
      %p302 = scmp.eq.s32.totalorder %s21, 0
      %p303 = por %p301, %p302
      %p304 = scmp.ne.s32.totalorder %s293, %s296
      %p305 = scmp.eq.s32.totalorder %s26, 1
      %p306 = por %p304, %p305
      %p307 = scmp.ne.s32.totalorder %s296, %s297
      %p308 = scmp.eq.s32.totalorder %s26, 0
      %p309 = por %p307, %p308
      %p310 = scmp.ne.s32.totalorder %s296, %s297
      %p311 = scmp.eq.s32.totalorder %s27, 1
      %p312 = por %p310, %p311
      %p314 = scmp.ne.s32.totalorder %s297, %s313
      %p315 = scmp.eq.s32.totalorder %s27, 0
      %p316 = por %p314, %p315
      %p317 = scmp.le.s32.totalorder 1, %s21
      %p318 = scmp.lt.s32.totalorder %s21, 3
      %p319 = pnand %p317, %p318
      %p320 = pneg %p319
      // Predicated region
      $region9: #{tpu_custom_call.1} parent=5 // pred_check
        _
      $region10: #{tpu_custom_call.1} parent=5 // pred_check_branch
        %322 = sbr.rel (%p319) target = $region12
      $region11: #{tpu_custom_call.1} parent=5 // pred_region
        %s323 = ssub.s32 %s21, 1
        // Predicated region
        $region13: #{tpu_custom_call.1} parent=11 // pred_check
          %p324 = pneg %p134
        $region14: #{tpu_custom_call.1} parent=11 // pred_check_branch
          %326 = sbr.rel (%p324) target = $region16
        $region15: #{tpu_custom_call.1} parent=11 // pred_region
          _
        $region16: #{tpu_custom_call.1} parent=11 // pred_fallthru
          _
        // Predicated region
        $region17: #{tpu_custom_call.1} parent=11 // pred_check
          %p327 = pneg %p155
        $region18: #{tpu_custom_call.1} parent=11 // pred_check_branch
          %329 = sbr.rel (%p327) target = $region20
        $region19: #{tpu_custom_call.1} parent=11 // pred_region
          _
        $region20: #{tpu_custom_call.1} parent=11 // pred_fallthru
          _
        // Predicated region
        $region21: #{tpu_custom_call.1} parent=11 // pred_check
          %p330 = pneg %p176
        $region22: #{tpu_custom_call.1} parent=11 // pred_check_branch
          %332 = sbr.rel (%p330) target = $region24
        $region23: #{tpu_custom_call.1} parent=11 // pred_region
          _
        $region24: #{tpu_custom_call.1} parent=11 // pred_fallthru
          _
        // Predicated region
        $region25: #{tpu_custom_call.1} parent=11 // pred_check
          %p333 = pneg %p197
        $region26: #{tpu_custom_call.1} parent=11 // pred_check_branch
          %335 = sbr.rel (%p333) target = $region28
        $region27: #{tpu_custom_call.1} parent=11 // pred_region
          _
        $region28: #{tpu_custom_call.1} parent=11 // pred_fallthru
          _
        // Predicated region
        $region29: #{tpu_custom_call.1} parent=11 // pred_check
          %p336 = pneg %p218
        $region30: #{tpu_custom_call.1} parent=11 // pred_check_branch
          %338 = sbr.rel (%p336) target = $region32
        $region31: #{tpu_custom_call.1} parent=11 // pred_region
          _
        $region32: #{tpu_custom_call.1} parent=11 // pred_fallthru
          _
        // Predicated region
        $region33: #{tpu_custom_call.1} parent=11 // pred_check
          %p339 = pneg %p239
        $region34: #{tpu_custom_call.1} parent=11 // pred_check_branch
          %341 = sbr.rel (%p339) target = $region36
        $region35: #{tpu_custom_call.1} parent=11 // pred_region
          _
        $region36: #{tpu_custom_call.1} parent=11 // pred_fallthru
          _
        // Predicated region
        $region37: #{tpu_custom_call.1} parent=11 // pred_check
          %p342 = pneg %p260
        $region38: #{tpu_custom_call.1} parent=11 // pred_check_branch
          %344 = sbr.rel (%p342) target = $region40
        $region39: #{tpu_custom_call.1} parent=11 // pred_region
          %s346 = ssub.s32 256, 256
          %347 = vsyncadd [#allocation6], %s346
          %s348 = sshll.u32 [#allocation5], 4
          %s349 = int_to_ptr.vmem [resolvable:$true] %s348
          %354 = dma.hbm_to_vmem [thread:$0]  %s9, 256, %s349, [#allocation6], 64, 64, 4
        $region40: #{tpu_custom_call.1} parent=11 // pred_fallthru
          _
        // Predicated region
        $region41: #{tpu_custom_call.1} parent=11 // pred_check
          %p355 = pneg %p281
        $region42: #{tpu_custom_call.1} parent=11 // pred_check_branch
          %357 = sbr.rel (%p355) target = $region44
        $region43: #{tpu_custom_call.1} parent=11 // pred_region
          _
        $region44: #{tpu_custom_call.1} parent=11 // pred_fallthru
          _
      $region12: #{tpu_custom_call.1} parent=5 // pred_fallthru
        _
      %p358 = scmp.lt.s32.totalorder %s21, 2
      // Predicated region
      $region45: #{tpu_custom_call.1} parent=5 // pred_check
        %p359 = pneg %p358
      $region46: #{tpu_custom_call.1} parent=5 // pred_check_branch
        %361 = sbr.rel (%p359) target = $region48
      $region47: #{tpu_custom_call.1} parent=5 // pred_region
        // Predicated region
        $region49: #{tpu_custom_call.1} parent=47 // pred_check
          %p362 = pneg %p55
        $region50: #{tpu_custom_call.1} parent=47 // pred_check_branch
          %364 = sbr.rel (%p362) target = $region52
        $region51: #{tpu_custom_call.1} parent=47 // pred_region
          %p365 = scmp.lt.s32.totalorder %s28, 1
          %s366 = scalar_select %p365, %s28, 1
          %p367 = scmp.lt.s32.totalorder %s29, 0
          %s368 = scalar_select %p367, %s29, 0
          %s369 = smul.addr %s366, 4
          %s370 = sadd.s32 %s368, %s369
          %s371 = smul.addr %s370, 4
          %s372 = scalar_lea.vmem %s0, %s371
        $region52: #{tpu_custom_call.1} parent=47 // pred_fallthru
          _
        // Predicated region
        $region53: #{tpu_custom_call.1} parent=47 // pred_check
          %p373 = pneg %p81
        $region54: #{tpu_custom_call.1} parent=47 // pred_check_branch
          %375 = sbr.rel (%p373) target = $region56
        $region55: #{tpu_custom_call.1} parent=47 // pred_region
          %p376 = scmp.lt.s32.totalorder %s28, 1
          %s377 = scalar_select %p376, %s28, 1
          %s378 = smul.addr %s377, 4
          %s379 = smul.addr %s378, 4
          %s380 = scalar_lea.vmem %s1, %s379
        $region56: #{tpu_custom_call.1} parent=47 // pred_fallthru
          _
        // Predicated region
        $region57: #{tpu_custom_call.1} parent=47 // pred_check
          %p381 = pneg %p107
        $region58: #{tpu_custom_call.1} parent=47 // pred_check_branch
          %383 = sbr.rel (%p381) target = $region60
        $region59: #{tpu_custom_call.1} parent=47 // pred_region
          %p384 = scmp.lt.s32.totalorder %s28, 1
          %s385 = scalar_select %p384, %s28, 1
          %s386 = smul.addr %s385, 4
          %s387 = smul.addr %s386, 4
          %s388 = scalar_lea.vmem %s2, %s387
        $region60: #{tpu_custom_call.1} parent=47 // pred_fallthru
          _
      $region48: #{tpu_custom_call.1} parent=5 // pred_fallthru
        _
      %p389 = scmp.le.s32.totalorder 1, %s21
      %p390 = scmp.lt.s32.totalorder %s21, 3
      %p391 = pnand %p389, %p390
      %p392 = pneg %p391
      // Predicated region
      $region61: #{tpu_custom_call.1} parent=5 // pred_check
        _
      $region62: #{tpu_custom_call.1} parent=5 // pred_check_branch
        %394 = sbr.rel (%p391) target = $region64
      $region63: #{tpu_custom_call.1} parent=5 // pred_region
        %s395 = ssub.s32 %s21, 1
        // Predicated region
        $region65: #{tpu_custom_call.1} parent=63 // pred_check
          %p396 = pneg %p260
        $region66: #{tpu_custom_call.1} parent=63 // pred_check_branch
          %398 = sbr.rel (%p396) target = $region68
        $region67: #{tpu_custom_call.1} parent=63 // pred_region
          %399 = dma.done [#allocation6], 256
        $region68: #{tpu_custom_call.1} parent=63 // pred_fallthru
          _
        %p400 = scmp.lt.s32.totalorder %s30, 1
        %s401 = scalar_select %p400, %s30, 1
        %p402 = scmp.lt.s32.totalorder %s31, 0
        %s403 = scalar_select %p402, %s31, 0
        %s404 = smul.addr %s401, 4
        %s405 = sadd.s32 %s403, %s404
        %s406 = smul.addr %s405, 4
        %s407 = scalar_lea.vmem %s0, %s406
        %p408 = pneg %p61
        %p409 = pneg %p58
        %p410 = scmp.lt.s32.totalorder %s30, 1
        %s411 = scalar_select %p410, %s30, 1
        %s412 = smul.addr %s411, 4
        %s413 = smul.addr %s412, 4
        %s414 = scalar_lea.vmem %s1, %s413
        %p415 = pneg %p87
        %p416 = pneg %p84
        %p417 = scmp.lt.s32.totalorder %s30, 1
        %s418 = scalar_select %p417, %s30, 1
        %s419 = smul.addr %s418, 4
        %s420 = smul.addr %s419, 4
        %s421 = scalar_lea.vmem %s2, %s420
        %p422 = pneg %p113
        %p423 = pneg %p110
        %p424 = pneg %p134
        %p425 = pneg %p131
        %p426 = pneg %p155
        %p427 = pneg %p152
        %p428 = pneg %p176
        %p429 = pneg %p173
        %p430 = pneg %p197
        %p431 = pneg %p194
        %p432 = pneg %p218
        %p433 = pneg %p215
        %p434 = pneg %p239
        %p435 = pneg %p236
        %p436 = pneg %p260
        %p437 = pneg %p257
        %p438 = pneg %p281
        %p439 = pneg %p278
        %p440 = pneg %p309
        %p441 = pneg %p306
        %s442 = sand.u32 %s296, 1
        %s443 = scalar_lea.sflag [#allocation7], %s442
        %s444 = sand.u32 %s296, 1
        %s445 = smul.addr %s444, 32
        %s446 = scalar_lea.vmem [#allocation8], %s445
        %p447 = scmp.lt.s32.totalorder %s30, 1
        %s448 = scalar_select %p447, %s30, 1
        %p449 = scmp.lt.s32.totalorder %s31, 0
        %s450 = scalar_select %p449, %s31, 0
        %s451 = smul.addr %s448, 4
        %s452 = sadd.s32 %s450, %s451
        %s453 = smul.addr %s452, 4
        %s454 = scalar_lea.vmem %s0, %s453
        %p455 = scmp.lt.s32.totalorder %s30, 1
        %s456 = scalar_select %p455, %s30, 1
        %s457 = smul.addr %s456, 4
        %s458 = smul.addr %s457, 4
        %s459 = scalar_lea.vmem %s1, %s458
        %p460 = scmp.lt.s32.totalorder %s30, 1
        %s461 = scalar_select %p460, %s30, 1
        %s462 = smul.addr %s461, 4
        %s463 = smul.addr %s462, 4
        %s464 = scalar_lea.vmem %s2, %s463
        %p466 = scmp.eq.s32.totalorder %s31, 0
        // Predicated region
        $region69: #{tpu_custom_call.1} parent=63 // pred_check
          %p467 = pneg %p466
        $region70: #{tpu_custom_call.1} parent=63 // pred_check_branch
          %469 = sbr.rel (%p467) target = $region72
        $region71: #{tpu_custom_call.1} parent=63 // pred_region
          %v470 = vld [vmem:[%s5] sm:$0xf]
          %v471 = vld [vmem:[%s5 + $0x4] sm:$0xf]
          %v472 = vld [vmem:[%s5 + $0x8] sm:$0xf]
          %v473 = vld [vmem:[%s5 + $0xc] sm:$0xf]
          %v474 = vld [vmem:[%s459] sm:$0xf]
          %v475 = vld [vmem:[%s459 + $0x4] sm:$0xf]
          %v476 = vld [vmem:[%s459 + $0x8] sm:$0xf]
          %v477 = vld [vmem:[%s459 + $0xc] sm:$0xf]
          %v478 = vld [vmem:[%s6] sm:$0xff]
          %v479 = vld [vmem:[%s6 + $0x8] sm:$0xff]
          %v480 = vld [vmem:[%s6 + $0x10] sm:$0xff]
          %v481 = vld [vmem:[%s6 + $0x18] sm:$0xff]
          %483 = vset.pattern.permute.xlu0 0
          %484 = vperm.xlu0 %483, %v478
          %v485 = vpop.permute.xlu0 %484
          %488 = vset.pattern.permute.xlu0 0
          %489 = vperm.xlu0 %488, %v479
          %v490 = vpop.permute.xlu0 %489
          %493 = vset.pattern.permute.xlu0 0
          %494 = vperm.xlu0 %493, %v480
          %v495 = vpop.permute.xlu0 %494
          %498 = vset.pattern.permute.xlu0 0
          %499 = vperm.xlu0 %498, %v481
          %v500 = vpop.permute.xlu0 %499
          %v506 = vunpack.c.l.b16 %v470
          %v507 = vunpack.c.l.b16 %v471
          %v508 = vunpack.c.l.b16 %v472
          %v509 = vunpack.c.l.b16 %v473
          %v510 = vpack.c.b16 %v507, %v506
          %v511 = vpack.c.b16 %v509, %v508
          %v516 = vunpack.c.l.b16 %v474
          %v517 = vunpack.c.l.b16 %v475
          %v518 = vunpack.c.l.b16 %v476
          %v519 = vunpack.c.l.b16 %v477
          %v520 = vpack.c.b16 %v517, %v516
          %v521 = vpack.c.b16 %v519, %v518
          %vm524 = vcmask 261120
          %v526 = vsel %vm524, %v510, 0
          %v529 = vsel %vm524, %v511, 0
          %531 = vmatprep.subr.bf16.mxu0 0
          %532 = vmatpush1.bf16.msra.mxu0 0
          %533 = vmatprep.subr.bf16.mxu0 0
          %534 = vmatpush1.bf16.msra.mxu0 0
          %535 = vmatprep.subr.bf16.mxu0 0
          %536 = vmatpush1.bf16.msra.mxu0 0
          %537 = vmatprep.subr.bf16.mxu0 0
          %538 = vmatpush1.bf16.msra.mxu0 0
          %539 = vmatprep.subr.bf16.mxu0 0
          %540 = vmatpush1.bf16.msra.mxu0 0
          %541 = vmatprep.subr.bf16.mxu0 0
          %542 = vmatpush1.bf16.msra.mxu0 0
          %543 = vmatprep.subr.bf16.mxu0 0
          %544 = vmatpush1.bf16.msra.mxu0 %v521
          %545 = vmatprep.subr.bf16.mxu0 0
          %546 = vmatpush1.bf16.msra.mxu0 %v520
          %547 = vmatprep.subr.bf16.mxu0 0
          %548 = vmatpush2.bf16.msra.mxu0 0
          %549 = vmatprep.subr.bf16.mxu0 0
          %550 = vmatpush2.bf16.msra.mxu0 0
          %551 = vmatprep.subr.bf16.mxu0 0
          %552 = vmatpush2.bf16.msra.mxu0 0
          %553 = vmatprep.subr.bf16.mxu0 0
          %554 = vmatpush2.bf16.msra.mxu0 0
          %555 = vmatprep.subr.bf16.mxu0 0
          %556 = vmatpush2.bf16.msra.mxu0 0
          %557 = vmatprep.subr.bf16.mxu0 0
          %558 = vmatpush2.bf16.msra.mxu0 0
          %559 = vmatprep.subr.bf16.mxu0 0
          %560 = vmatpush2.bf16.msra.mxu0 0
          %561 = vmatprep.subr.bf16.mxu0 0
          %562 = vmatpush2.bf16.msra.mxu0 0
          %563 = vmatprep.mubr.bf16.mxu0 0
          %564 = vmatmul.mubr.bf16.gmra.mxu0 %v526
          %v565 = vpop.f32.mrf.mxu0
          %v566 = vadd.f32 %v485, %v565
          %v567 = vpop.f32.mrf.mxu0
          %v568 = vpop.f32.mrf.mxu0
          %v569 = vadd.f32 %v490, %v568
          %v570 = vpop.f32.mrf.mxu0
          %571 = vmatprep.mubr.bf16.mxu0 0
          %572 = vmatmul.mubr.bf16.gmra.mxu0 %v529
          %v573 = vpop.f32.mrf.mxu0
          %v574 = vadd.f32 %v495, %v573
          %v575 = vpop.f32.mrf.mxu0
          %v576 = vpop.f32.mrf.mxu0
          %v577 = vadd.f32 %v500, %v576
          %v578 = vpop.f32.mrf.mxu0
          %579 = vdwg.mxu0
          %v580 = vld [vmem:[%s7] sm:$0xf]
          %v581 = vld [vmem:[%s7 + $0x4] sm:$0xf]
          %v582 = vld [vmem:[%s7 + $0x8] sm:$0xf]
          %v583 = vld [vmem:[%s7 + $0xc] sm:$0xf]
          %v584 = vld [vmem:[%s464] sm:$0xf]
          %v585 = vld [vmem:[%s464 + $0x4] sm:$0xf]
          %v586 = vld [vmem:[%s464 + $0x8] sm:$0xf]
          %v587 = vld [vmem:[%s464 + $0xc] sm:$0xf]
          %v588 = vld [vmem:[%s8] sm:$0xff]
          %v589 = vld [vmem:[%s8 + $0x8] sm:$0xff]
          %v590 = vld [vmem:[%s8 + $0x10] sm:$0xff]
          %v591 = vld [vmem:[%s8 + $0x18] sm:$0xff]
          %593 = vset.pattern.permute.xlu0 0
          %594 = vperm.xlu0 %593, %v588
          %v595 = vpop.permute.xlu0 %594
          %598 = vset.pattern.permute.xlu0 0
          %599 = vperm.xlu0 %598, %v589
          %v600 = vpop.permute.xlu0 %599
          %603 = vset.pattern.permute.xlu0 0
          %604 = vperm.xlu0 %603, %v590
          %v605 = vpop.permute.xlu0 %604
          %608 = vset.pattern.permute.xlu0 0
          %609 = vperm.xlu0 %608, %v591
          %v610 = vpop.permute.xlu0 %609
          %v616 = vunpack.c.l.b16 %v580
          %v617 = vunpack.c.l.b16 %v581
          %v618 = vunpack.c.l.b16 %v582
          %v619 = vunpack.c.l.b16 %v583
          %v620 = vpack.c.b16 %v617, %v616
          %v621 = vpack.c.b16 %v619, %v618
          %v626 = vunpack.c.l.b16 %v584
          %v627 = vunpack.c.l.b16 %v585
          %v628 = vunpack.c.l.b16 %v586
          %v629 = vunpack.c.l.b16 %v587
          %v630 = vpack.c.b16 %v627, %v626
          %v631 = vpack.c.b16 %v629, %v628
          %v635 = vsel %vm524, %v620, 0
          %v638 = vsel %vm524, %v621, 0
          %640 = vmatprep.subr.bf16.mxu0 0
          %641 = vmatpush1.bf16.msra.mxu0 0
          %642 = vmatprep.subr.bf16.mxu0 0
          %643 = vmatpush1.bf16.msra.mxu0 0
          %644 = vmatprep.subr.bf16.mxu0 0
          %645 = vmatpush1.bf16.msra.mxu0 0
          %646 = vmatprep.subr.bf16.mxu0 0
          %647 = vmatpush1.bf16.msra.mxu0 0
          %648 = vmatprep.subr.bf16.mxu0 0
          %649 = vmatpush1.bf16.msra.mxu0 0
          %650 = vmatprep.subr.bf16.mxu0 0
          %651 = vmatpush1.bf16.msra.mxu0 0
          %652 = vmatprep.subr.bf16.mxu0 0
          %653 = vmatpush1.bf16.msra.mxu0 %v631
          %654 = vmatprep.subr.bf16.mxu0 0
          %655 = vmatpush1.bf16.msra.mxu0 %v630
          %656 = vmatprep.subr.bf16.mxu0 0
          %657 = vmatpush2.bf16.msra.mxu0 0
          %658 = vmatprep.subr.bf16.mxu0 0
          %659 = vmatpush2.bf16.msra.mxu0 0
          %660 = vmatprep.subr.bf16.mxu0 0
          %661 = vmatpush2.bf16.msra.mxu0 0
          %662 = vmatprep.subr.bf16.mxu0 0
          %663 = vmatpush2.bf16.msra.mxu0 0
          %664 = vmatprep.subr.bf16.mxu0 0
          %665 = vmatpush2.bf16.msra.mxu0 0
          %666 = vmatprep.subr.bf16.mxu0 0
          %667 = vmatpush2.bf16.msra.mxu0 0
          %668 = vmatprep.subr.bf16.mxu0 0
          %669 = vmatpush2.bf16.msra.mxu0 0
          %670 = vmatprep.subr.bf16.mxu0 0
          %671 = vmatpush2.bf16.msra.mxu0 0
          %672 = vmatprep.mubr.bf16.mxu0 0
          %673 = vmatmul.mubr.bf16.gmra.mxu0 %v635
          %v674 = vpop.f32.mrf.mxu0
          %v675 = vadd.f32 %v595, %v674
          %v676 = vpop.f32.mrf.mxu0
          %v677 = vpop.f32.mrf.mxu0
          %v678 = vadd.f32 %v600, %v677
          %v679 = vpop.f32.mrf.mxu0
          %680 = vmatprep.mubr.bf16.mxu0 0
          %681 = vmatmul.mubr.bf16.gmra.mxu0 %v638
          %v682 = vpop.f32.mrf.mxu0
          %v683 = vadd.f32 %v605, %v682
          %v684 = vpop.f32.mrf.mxu0
          %v685 = vpop.f32.mrf.mxu0
          %v686 = vadd.f32 %v610, %v685
          %v687 = vpop.f32.mrf.mxu0
          %688 = vdwg.mxu0
          %v689 = vpack.c.bf16 %v569, %v566
          %v690 = vpack.c.bf16 %v577, %v574
          %v693 = vunpack.c.l.b16 %v689
          %v694 = vunpack.c.h.b16 %v689
          %v695 = vunpack.c.l.b16 %v690
          %v696 = vunpack.c.h.b16 %v690
          %v697 = vpack.c.b16 %v693, %v693
          %v698 = vpack.c.b16 %v694, %v694
          %v699 = vpack.c.b16 %v695, %v695
          %v700 = vpack.c.b16 %v696, %v696
          %705 = vst [vmem:[#allocation2] sm:$0xf] %v697
          %706 = vst [vmem:[#allocation2 + $0x4] sm:$0xf] %v698
          %707 = vst [vmem:[#allocation2 + $0x8] sm:$0xf] %v699
          %708 = vst [vmem:[#allocation2 + $0xc] sm:$0xf] %v700
          %v709 = vpack.c.bf16 %v678, %v675
          %v710 = vpack.c.bf16 %v686, %v683
          %v713 = vunpack.c.l.b16 %v709
          %v714 = vunpack.c.h.b16 %v709
          %v715 = vunpack.c.l.b16 %v710
          %v716 = vunpack.c.h.b16 %v710
          %v717 = vpack.c.b16 %v713, %v713
          %v718 = vpack.c.b16 %v714, %v714
          %v719 = vpack.c.b16 %v715, %v715
          %v720 = vpack.c.b16 %v716, %v716
          %725 = vst [vmem:[#allocation3] sm:$0xf] %v717
          %726 = vst [vmem:[#allocation3 + $0x4] sm:$0xf] %v718
          %727 = vst [vmem:[#allocation3 + $0x8] sm:$0xf] %v719
          %728 = vst [vmem:[#allocation3 + $0xc] sm:$0xf] %v720
        $region72: #{tpu_custom_call.1} parent=63 // pred_fallthru
          _
        %v729 = vld [vmem:[%s3] sm:$0xf]
        %v730 = vld [vmem:[%s3 + $0x4] sm:$0xf]
        %v731 = vld [vmem:[%s3 + $0x8] sm:$0xf]
        %v732 = vld [vmem:[%s3 + $0xc] sm:$0xf]
        %v733 = vld [vmem:[%s454] sm:$0xf]
        %v734 = vld [vmem:[%s454 + $0x4] sm:$0xf]
        %v735 = vld [vmem:[%s454 + $0x8] sm:$0xf]
        %v736 = vld [vmem:[%s454 + $0xc] sm:$0xf]
        %v737 = vld [vmem:[%s4] sm:$0xff]
        %v738 = vld [vmem:[%s4 + $0x8] sm:$0xff]
        %v739 = vld [vmem:[%s4 + $0x10] sm:$0xff]
        %v740 = vld [vmem:[%s4 + $0x18] sm:$0xff]
        %742 = vset.pattern.permute.xlu0 0
        %743 = vperm.xlu0 %742, %v737
        %v744 = vpop.permute.xlu0 %743
        %747 = vset.pattern.permute.xlu0 0
        %748 = vperm.xlu0 %747, %v738
        %v749 = vpop.permute.xlu0 %748
        %752 = vset.pattern.permute.xlu0 0
        %753 = vperm.xlu0 %752, %v739
        %v754 = vpop.permute.xlu0 %753
        %757 = vset.pattern.permute.xlu0 0
        %758 = vperm.xlu0 %757, %v740
        %v759 = vpop.permute.xlu0 %758
        %v765 = vunpack.c.l.b16 %v729
        %v766 = vunpack.c.l.b16 %v730
        %v767 = vunpack.c.l.b16 %v731
        %v768 = vunpack.c.l.b16 %v732
        %v769 = vpack.c.b16 %v766, %v765
        %v770 = vpack.c.b16 %v768, %v767
        %v775 = vunpack.c.l.b16 %v733
        %v776 = vunpack.c.l.b16 %v734
        %v777 = vunpack.c.l.b16 %v735
        %v778 = vunpack.c.l.b16 %v736
        %v779 = vpack.c.b16 %v776, %v775
        %v780 = vpack.c.b16 %v778, %v777
        %vm783 = vcmask 261120
        %v785 = vsel %vm783, %v769, 0
        %v788 = vsel %vm783, %v770, 0
        %790 = vmatprep.subr.bf16.mxu0 0
        %791 = vmatpush1.bf16.msra.mxu0 0
        %792 = vmatprep.subr.bf16.mxu0 0
        %793 = vmatpush1.bf16.msra.mxu0 0
        %794 = vmatprep.subr.bf16.mxu0 0
        %795 = vmatpush1.bf16.msra.mxu0 0
        %796 = vmatprep.subr.bf16.mxu0 0
        %797 = vmatpush1.bf16.msra.mxu0 0
        %798 = vmatprep.subr.bf16.mxu0 0
        %799 = vmatpush1.bf16.msra.mxu0 0
        %800 = vmatprep.subr.bf16.mxu0 0
        %801 = vmatpush1.bf16.msra.mxu0 0
        %802 = vmatprep.subr.bf16.mxu0 0
        %803 = vmatpush1.bf16.msra.mxu0 %v780
        %804 = vmatprep.subr.bf16.mxu0 0
        %805 = vmatpush1.bf16.msra.mxu0 %v779
        %806 = vmatprep.subr.bf16.mxu0 0
        %807 = vmatpush2.bf16.msra.mxu0 0
        %808 = vmatprep.subr.bf16.mxu0 0
        %809 = vmatpush2.bf16.msra.mxu0 0
        %810 = vmatprep.subr.bf16.mxu0 0
        %811 = vmatpush2.bf16.msra.mxu0 0
        %812 = vmatprep.subr.bf16.mxu0 0
        %813 = vmatpush2.bf16.msra.mxu0 0
        %814 = vmatprep.subr.bf16.mxu0 0
        %815 = vmatpush2.bf16.msra.mxu0 0
        %816 = vmatprep.subr.bf16.mxu0 0
        %817 = vmatpush2.bf16.msra.mxu0 0
        %818 = vmatprep.subr.bf16.mxu0 0
        %819 = vmatpush2.bf16.msra.mxu0 0
        %820 = vmatprep.subr.bf16.mxu0 0
        %821 = vmatpush2.bf16.msra.mxu0 0
        %822 = vmatprep.mubr.bf16.mxu0 0
        %823 = vmatmul.mubr.bf16.gmra.mxu0 %v785
        %v824 = vpop.f32.mrf.mxu0
        %v825 = vadd.f32 %v744, %v824
        %v826 = vpop.f32.mrf.mxu0
        %v827 = vpop.f32.mrf.mxu0
        %v828 = vadd.f32 %v749, %v827
        %v829 = vpop.f32.mrf.mxu0
        %830 = vmatprep.mubr.bf16.mxu0 0
        %831 = vmatmul.mubr.bf16.gmra.mxu0 %v788
        %v832 = vpop.f32.mrf.mxu0
        %v833 = vadd.f32 %v754, %v832
        %v834 = vpop.f32.mrf.mxu0
        %v835 = vpop.f32.mrf.mxu0
        %v836 = vadd.f32 %v759, %v835
        %v837 = vpop.f32.mrf.mxu0
        %838 = vdwg.mxu0
        %v839 = vpack.c.bf16 %v828, %v825
        %v840 = vpack.c.bf16 %v836, %v833
        %v841 = vlaneseq
        %v842 = vand.u32 %v841, 127
        %vm843 = vcmp.lt.s32.totalorder %v842, 16
        %v844 = vsel %vm843, 0.0, -1e+30
        %v845 = vld [vmem:[#allocation2] sm:$0xf]
        %v846 = vld [vmem:[#allocation3] sm:$0xf]
        %847 = vxpose.xlu0.c.b16.start [1/8] %v839, 128
        %848 = vxpose.xlu0.c.b16.cont [2/8] 0, 128
        %849 = vxpose.xlu0.c.b16.cont [3/8] 0, 128
        %850 = vxpose.xlu0.c.b16.cont [4/8] 0, 128
        %851 = vxpose.xlu0.c.b16.cont [5/8] 0, 128
        %852 = vxpose.xlu0.c.b16.cont [6/8] 0, 128
        %853 = vxpose.xlu0.c.b16.cont [7/8] 0, 128
        %854 = vxpose.xlu0.c.b16.end [8/8] 0, 128
        %v855 = vpop.trf.xlu0
        %v856 = vpop.trf.xlu0
        %v857 = vpop.trf.xlu0
        %v858 = vpop.trf.xlu0
        %v859 = vpop.trf.xlu0
        %v860 = vpop.trf.xlu0
        %v861 = vpop.trf.xlu0
        %v862 = vpop.trf.xlu0
        %vm863 = vcmask 64512
        %v865 = vsel %vm863, %v855, 0
        %v868 = vsel %vm863, %v856, 0
        %v871 = vsel %vm863, %v857, 0
        %v874 = vsel %vm863, %v858, 0
        %v877 = vsel %vm863, %v859, 0
        %v880 = vsel %vm863, %v860, 0
        %v883 = vsel %vm863, %v861, 0
        %v886 = vsel %vm863, %v862, 0
        %vm888 = vcmask 1043456
        %v890 = vsel %vm888, %v845, 0
        %892 = vmatprep.subr.bf16.mxu0 0
        %893 = vmatpush1.bf16.msra.mxu0 0
        %894 = vmatprep.subr.bf16.mxu0 0
        %895 = vmatpush1.bf16.msra.mxu0 0
        %896 = vmatprep.subr.bf16.mxu0 0
        %897 = vmatpush1.bf16.msra.mxu0 0
        %898 = vmatprep.subr.bf16.mxu0 0
        %899 = vmatpush1.bf16.msra.mxu0 0
        %900 = vmatprep.subr.bf16.mxu0 0
        %901 = vmatpush1.bf16.msra.mxu0 0
        %902 = vmatprep.subr.bf16.mxu0 0
        %903 = vmatpush1.bf16.msra.mxu0 0
        %904 = vmatprep.subr.bf16.mxu0 0
        %905 = vmatpush1.bf16.msra.mxu0 0
        %906 = vmatprep.subr.bf16.mxu0 0
        %907 = vmatpush1.bf16.msra.mxu0 %v890
        %908 = vmatprep.subr.bf16.mxu0 0
        %909 = vmatpush2.bf16.msra.mxu0 0
        %910 = vmatprep.subr.bf16.mxu0 0
        %911 = vmatpush2.bf16.msra.mxu0 0
        %912 = vmatprep.subr.bf16.mxu0 0
        %913 = vmatpush2.bf16.msra.mxu0 0
        %914 = vmatprep.subr.bf16.mxu0 0
        %915 = vmatpush2.bf16.msra.mxu0 0
        %916 = vmatprep.subr.bf16.mxu0 0
        %917 = vmatpush2.bf16.msra.mxu0 0
        %918 = vmatprep.subr.bf16.mxu0 0
        %919 = vmatpush2.bf16.msra.mxu0 0
        %920 = vmatprep.subr.bf16.mxu0 0
        %921 = vmatpush2.bf16.msra.mxu0 0
        %922 = vmatprep.subr.bf16.mxu0 0
        %923 = vmatpush2.bf16.msra.mxu0 0
        %924 = vmatprep.mubr.bf16.mxu0 0
        %925 = vmatmul.mubr.bf16.gmra.mxu0 %v865
        %v926 = vpop.f32.mrf.mxu0
        %v927 = vadd.f32 %v844, %v926
        %v928 = vpop.f32.mrf.mxu0
        %v929 = vpop.f32.mrf.mxu0
        %v930 = vadd.f32 %v844, %v929
        %v931 = vpop.f32.mrf.mxu0
        %932 = vmatprep.mubr.bf16.mxu0 0
        %933 = vmatmul.mubr.bf16.gmra.mxu0 %v868
        %v934 = vpop.f32.mrf.mxu0
        %v935 = vadd.f32 %v844, %v934
        %v936 = vpop.f32.mrf.mxu0
        %v937 = vpop.f32.mrf.mxu0
        %v938 = vadd.f32 %v844, %v937
        %v939 = vpop.f32.mrf.mxu0
        %940 = vmatprep.mubr.bf16.mxu0 0
        %941 = vmatmul.mubr.bf16.gmra.mxu0 %v871
        %v942 = vpop.f32.mrf.mxu0
        %v943 = vadd.f32 %v844, %v942
        %v944 = vpop.f32.mrf.mxu0
        %v945 = vpop.f32.mrf.mxu0
        %v946 = vadd.f32 %v844, %v945
        %v947 = vpop.f32.mrf.mxu0
        %948 = vmatprep.mubr.bf16.mxu0 0
        %949 = vmatmul.mubr.bf16.gmra.mxu0 %v874
        %v950 = vpop.f32.mrf.mxu0
        %v951 = vadd.f32 %v844, %v950
        %v952 = vpop.f32.mrf.mxu0
        %v953 = vpop.f32.mrf.mxu0
        %v954 = vadd.f32 %v844, %v953
        %v955 = vpop.f32.mrf.mxu0
        %956 = vmatprep.mubr.bf16.mxu0 0
        %957 = vmatmul.mubr.bf16.gmra.mxu0 %v877
        %v958 = vpop.f32.mrf.mxu0
        %v959 = vadd.f32 %v844, %v958
        %v960 = vpop.f32.mrf.mxu0
        %v961 = vpop.f32.mrf.mxu0
        %v962 = vadd.f32 %v844, %v961
        %v963 = vpop.f32.mrf.mxu0
        %964 = vmatprep.mubr.bf16.mxu0 0
        %965 = vmatmul.mubr.bf16.gmra.mxu0 %v880
        %v966 = vpop.f32.mrf.mxu0
        %v967 = vadd.f32 %v844, %v966
        %v968 = vpop.f32.mrf.mxu0
        %v969 = vpop.f32.mrf.mxu0
        %v970 = vadd.f32 %v844, %v969
        %v971 = vpop.f32.mrf.mxu0
        %972 = vmatprep.mubr.bf16.mxu0 0
        %973 = vmatmul.mubr.bf16.gmra.mxu0 %v883
        %v974 = vpop.f32.mrf.mxu0
        %v975 = vadd.f32 %v844, %v974
        %v976 = vpop.f32.mrf.mxu0
        %v977 = vpop.f32.mrf.mxu0
        %v978 = vadd.f32 %v844, %v977
        %v979 = vpop.f32.mrf.mxu0
        %980 = vmatprep.mubr.bf16.mxu0 0
        %981 = vmatmul.mubr.bf16.gmra.mxu0 %v886
        %v982 = vpop.f32.mrf.mxu0
        %v983 = vadd.f32 %v844, %v982
        %v984 = vpop.f32.mrf.mxu0
        %v985 = vpop.f32.mrf.mxu0
        %v986 = vadd.f32 %v844, %v985
        %v987 = vpop.f32.mrf.mxu0
        %988 = vdwg.mxu0
        %989 = vmax.xlane.f32.xlu0 %v927
        %v990 = vpop.xlane.xlu0 %989
        %991 = vmax.xlane.f32.xlu0 %v930
        %v992 = vpop.xlane.xlu0 %991
        %993 = vmax.xlane.f32.xlu0 %v935
        %v994 = vpop.xlane.xlu0 %993
        %995 = vmax.xlane.f32.xlu0 %v938
        %v996 = vpop.xlane.xlu0 %995
        %997 = vmax.xlane.f32.xlu0 %v943
        %v998 = vpop.xlane.xlu0 %997
        %999 = vmax.xlane.f32.xlu0 %v946
        %v1000 = vpop.xlane.xlu0 %999
        %1001 = vmax.xlane.f32.xlu0 %v951
        %v1002 = vpop.xlane.xlu0 %1001
        %1003 = vmax.xlane.f32.xlu0 %v954
        %v1004 = vpop.xlane.xlu0 %1003
        %1005 = vmax.xlane.f32.xlu0 %v959
        %v1006 = vpop.xlane.xlu0 %1005
        %1007 = vmax.xlane.f32.xlu0 %v962
        %v1008 = vpop.xlane.xlu0 %1007
        %1009 = vmax.xlane.f32.xlu0 %v967
        %v1010 = vpop.xlane.xlu0 %1009
        %1011 = vmax.xlane.f32.xlu0 %v970
        %v1012 = vpop.xlane.xlu0 %1011
        %1013 = vmax.xlane.f32.xlu0 %v975
        %v1014 = vpop.xlane.xlu0 %1013
        %1015 = vmax.xlane.f32.xlu0 %v978
        %v1016 = vpop.xlane.xlu0 %1015
        %1017 = vmax.xlane.f32.xlu0 %v983
        %v1018 = vpop.xlane.xlu0 %1017
        %1019 = vmax.xlane.f32.xlu0 %v986
        %v1020 = vpop.xlane.xlu0 %1019
        %v1021 = vsub.f32 %v927, %v990
        %v1022 = vsub.f32 %v930, %v992
        %v1023 = vsub.f32 %v935, %v994
        %v1024 = vsub.f32 %v938, %v996
        %v1025 = vsub.f32 %v943, %v998
        %v1026 = vsub.f32 %v946, %v1000
        %v1027 = vsub.f32 %v951, %v1002
        %v1028 = vsub.f32 %v954, %v1004
        %v1029 = vsub.f32 %v959, %v1006
        %v1030 = vsub.f32 %v962, %v1008
        %v1031 = vsub.f32 %v967, %v1010
        %v1032 = vsub.f32 %v970, %v1012
        %v1033 = vsub.f32 %v975, %v1014
        %v1034 = vsub.f32 %v978, %v1016
        %v1035 = vsub.f32 %v983, %v1018
        %v1036 = vsub.f32 %v986, %v1020
        %v1037 = vmul.f32 %v1021, 1.442695
        %v1038 = vpow.pop %v1037
        %v1039 = vmul.f32 %v1022, 1.442695
        %v1040 = vpow.pop %v1039
        %v1041 = vmul.f32 %v1023, 1.442695
        %v1042 = vpow.pop %v1041
        %v1043 = vmul.f32 %v1024, 1.442695
        %v1044 = vpow.pop %v1043
        %v1045 = vmul.f32 %v1025, 1.442695
        %v1046 = vpow.pop %v1045
        %v1047 = vmul.f32 %v1026, 1.442695
        %v1048 = vpow.pop %v1047
        %v1049 = vmul.f32 %v1027, 1.442695
        %v1050 = vpow.pop %v1049
        %v1051 = vmul.f32 %v1028, 1.442695
        %v1052 = vpow.pop %v1051
        %v1053 = vmul.f32 %v1029, 1.442695
        %v1054 = vpow.pop %v1053
        %v1055 = vmul.f32 %v1030, 1.442695
        %v1056 = vpow.pop %v1055
        %v1057 = vmul.f32 %v1031, 1.442695
        %v1058 = vpow.pop %v1057
        %v1059 = vmul.f32 %v1032, 1.442695
        %v1060 = vpow.pop %v1059
        %v1061 = vmul.f32 %v1033, 1.442695
        %v1062 = vpow.pop %v1061
        %v1063 = vmul.f32 %v1034, 1.442695
        %v1064 = vpow.pop %v1063
        %v1065 = vmul.f32 %v1035, 1.442695
        %v1066 = vpow.pop %v1065
        %v1067 = vmul.f32 %v1036, 1.442695
        %v1068 = vpow.pop %v1067
        %1069 = vadd.xlane.f32.xlu0 %v1038
        %v1070 = vpop.xlane.xlu0 %1069
        %1071 = vadd.xlane.f32.xlu0 %v1040
        %v1072 = vpop.xlane.xlu0 %1071
        %1073 = vadd.xlane.f32.xlu0 %v1042
        %v1074 = vpop.xlane.xlu0 %1073
        %1075 = vadd.xlane.f32.xlu0 %v1044
        %v1076 = vpop.xlane.xlu0 %1075
        %1077 = vadd.xlane.f32.xlu0 %v1046
        %v1078 = vpop.xlane.xlu0 %1077
        %1079 = vadd.xlane.f32.xlu0 %v1048
        %v1080 = vpop.xlane.xlu0 %1079
        %1081 = vadd.xlane.f32.xlu0 %v1050
        %v1082 = vpop.xlane.xlu0 %1081
        %1083 = vadd.xlane.f32.xlu0 %v1052
        %v1084 = vpop.xlane.xlu0 %1083
        %1085 = vadd.xlane.f32.xlu0 %v1054
        %v1086 = vpop.xlane.xlu0 %1085
        %1087 = vadd.xlane.f32.xlu0 %v1056
        %v1088 = vpop.xlane.xlu0 %1087
        %1089 = vadd.xlane.f32.xlu0 %v1058
        %v1090 = vpop.xlane.xlu0 %1089
        %1091 = vadd.xlane.f32.xlu0 %v1060
        %v1092 = vpop.xlane.xlu0 %1091
        %1093 = vadd.xlane.f32.xlu0 %v1062
        %v1094 = vpop.xlane.xlu0 %1093
        %1095 = vadd.xlane.f32.xlu0 %v1064
        %v1096 = vpop.xlane.xlu0 %1095
        %1097 = vadd.xlane.f32.xlu0 %v1066
        %v1098 = vpop.xlane.xlu0 %1097
        %1099 = vadd.xlane.f32.xlu0 %v1068
        %v1100 = vpop.xlane.xlu0 %1099
        %v1101 = vrcp.pop %v1070
        %v1102 = vrcp.pop %v1072
        %v1103 = vrcp.pop %v1074
        %v1104 = vrcp.pop %v1076
        %v1105 = vrcp.pop %v1078
        %v1106 = vrcp.pop %v1080
        %v1107 = vrcp.pop %v1082
        %v1108 = vrcp.pop %v1084
        %v1109 = vrcp.pop %v1086
        %v1110 = vrcp.pop %v1088
        %v1111 = vrcp.pop %v1090
        %v1112 = vrcp.pop %v1092
        %v1113 = vrcp.pop %v1094
        %v1114 = vrcp.pop %v1096
        %v1115 = vrcp.pop %v1098
        %v1116 = vrcp.pop %v1100
        %v1117 = vmul.f32 %v1038, %v1101
        %v1118 = vmul.f32 %v1040, %v1102
        %v1119 = vmul.f32 %v1042, %v1103
        %v1120 = vmul.f32 %v1044, %v1104
        %v1121 = vmul.f32 %v1046, %v1105
        %v1122 = vmul.f32 %v1048, %v1106
        %v1123 = vmul.f32 %v1050, %v1107
        %v1124 = vmul.f32 %v1052, %v1108
        %v1125 = vmul.f32 %v1054, %v1109
        %v1126 = vmul.f32 %v1056, %v1110
        %v1127 = vmul.f32 %v1058, %v1111
        %v1128 = vmul.f32 %v1060, %v1112
        %v1129 = vmul.f32 %v1062, %v1113
        %v1130 = vmul.f32 %v1064, %v1114
        %v1131 = vmul.f32 %v1066, %v1115
        %v1132 = vmul.f32 %v1068, %v1116
        %v1133 = vpack.c.bf16 %v1118, %v1117
        %v1134 = vpack.c.bf16 %v1120, %v1119
        %v1135 = vpack.c.bf16 %v1122, %v1121
        %v1136 = vpack.c.bf16 %v1124, %v1123
        %v1137 = vpack.c.bf16 %v1126, %v1125
        %v1138 = vpack.c.bf16 %v1128, %v1127
        %v1139 = vpack.c.bf16 %v1130, %v1129
        %v1140 = vpack.c.bf16 %v1132, %v1131
        %1141 = vmatprep.subr.bf16.mxu0 0
        %1142 = vmatpush1.bf16.xpose.msra.mxu0 %v1140
        %1143 = vmatprep.subr.bf16.mxu0 0
        %1144 = vmatpush1.bf16.xpose.msra.mxu0 %v1139
        %1145 = vmatprep.subr.bf16.mxu0 0
        %1146 = vmatpush1.bf16.xpose.msra.mxu0 %v1138
        %1147 = vmatprep.subr.bf16.mxu0 0
        %1148 = vmatpush1.bf16.xpose.msra.mxu0 %v1137
        %1149 = vmatprep.subr.bf16.mxu0 0
        %1150 = vmatpush1.bf16.xpose.msra.mxu0 %v1136
        %1151 = vmatprep.subr.bf16.mxu0 0
        %1152 = vmatpush1.bf16.xpose.msra.mxu0 %v1135
        %1153 = vmatprep.subr.bf16.mxu0 0
        %1154 = vmatpush1.bf16.xpose.msra.mxu0 %v1134
        %1155 = vmatprep.subr.bf16.mxu0 0
        %1156 = vmatpush1.bf16.xpose.msra.mxu0 %v1133
        %1157 = vmatprep.subr.bf16.mxu0 0
        %1158 = vmatpush2.bf16.xpose.msra.mxu0 0
        %1159 = vmatprep.subr.bf16.mxu0 0
        %1160 = vmatpush2.bf16.xpose.msra.mxu0 0
        %1161 = vmatprep.subr.bf16.mxu0 0
        %1162 = vmatpush2.bf16.xpose.msra.mxu0 0
        %1163 = vmatprep.subr.bf16.mxu0 0
        %1164 = vmatpush2.bf16.xpose.msra.mxu0 0
        %1165 = vmatprep.subr.bf16.mxu0 0
        %1166 = vmatpush2.bf16.xpose.msra.mxu0 0
        %1167 = vmatprep.subr.bf16.mxu0 0
        %1168 = vmatpush2.bf16.xpose.msra.mxu0 0
        %1169 = vmatprep.subr.bf16.mxu0 0
        %1170 = vmatpush2.bf16.xpose.msra.mxu0 0
        %1171 = vmatprep.subr.bf16.mxu0 0
        %1172 = vmatpush2.bf16.xpose.msra.mxu0 0
        %1173 = vmatprep.mubr.bf16.mxu0 0
        %1174 = vmatmul.mubr.bf16.gmra.mxu0 %v846
        %v1175 = vpop.f32.mrf.mxu0
        %v1176 = vadd.f32 0.0, %v1175
        %v1177 = vpop.f32.mrf.mxu0
        %v1178 = vpop.f32.mrf.mxu0
        %v1179 = vpop.f32.mrf.mxu0
        %1180 = vdwg.mxu0
        %v1181 = vpack.c.bf16 %v1176, %v1176
        %1182 = vst [vmem:[#allocation4] sm:$0xf] %v1181
        %v1183 = vld [vmem:[#allocation2 + $0x4] sm:$0xf]
        %v1184 = vld [vmem:[#allocation3 + $0x4] sm:$0xf]
        %v1186 = vrot.slane %v839, 4
        %1188 = vxpose.xlu0.c.b16.start [1/8] %v1186, 128
        %1189 = vxpose.xlu0.c.b16.cont [2/8] 0, 128
        %1190 = vxpose.xlu0.c.b16.cont [3/8] 0, 128
        %1191 = vxpose.xlu0.c.b16.cont [4/8] 0, 128
        %1192 = vxpose.xlu0.c.b16.cont [5/8] 0, 128
        %1193 = vxpose.xlu0.c.b16.cont [6/8] 0, 128
        %1194 = vxpose.xlu0.c.b16.cont [7/8] 0, 128
        %1195 = vxpose.xlu0.c.b16.end [8/8] 0, 128
        %v1196 = vpop.trf.xlu0
        %v1197 = vpop.trf.xlu0
        %v1198 = vpop.trf.xlu0
        %v1199 = vpop.trf.xlu0
        %v1200 = vpop.trf.xlu0
        %v1201 = vpop.trf.xlu0
        %v1202 = vpop.trf.xlu0
        %v1203 = vpop.trf.xlu0
        %v1205 = vsel %vm863, %v1196, 0
        %v1208 = vsel %vm863, %v1197, 0
        %v1211 = vsel %vm863, %v1198, 0
        %v1214 = vsel %vm863, %v1199, 0
        %v1217 = vsel %vm863, %v1200, 0
        %v1220 = vsel %vm863, %v1201, 0
        %v1223 = vsel %vm863, %v1202, 0
        %v1226 = vsel %vm863, %v1203, 0
        %v1229 = vsel %vm888, %v1183, 0
        %1231 = vmatprep.subr.bf16.mxu0 0
        %1232 = vmatpush1.bf16.msra.mxu0 0
        %1233 = vmatprep.subr.bf16.mxu0 0
        %1234 = vmatpush1.bf16.msra.mxu0 0
        %1235 = vmatprep.subr.bf16.mxu0 0
        %1236 = vmatpush1.bf16.msra.mxu0 0
        %1237 = vmatprep.subr.bf16.mxu0 0
        %1238 = vmatpush1.bf16.msra.mxu0 0
        %1239 = vmatprep.subr.bf16.mxu0 0
        %1240 = vmatpush1.bf16.msra.mxu0 0
        %1241 = vmatprep.subr.bf16.mxu0 0
        %1242 = vmatpush1.bf16.msra.mxu0 0
        %1243 = vmatprep.subr.bf16.mxu0 0
        %1244 = vmatpush1.bf16.msra.mxu0 0
        %1245 = vmatprep.subr.bf16.mxu0 0
        %1246 = vmatpush1.bf16.msra.mxu0 %v1229
        %1247 = vmatprep.subr.bf16.mxu0 0
        %1248 = vmatpush2.bf16.msra.mxu0 0
        %1249 = vmatprep.subr.bf16.mxu0 0
        %1250 = vmatpush2.bf16.msra.mxu0 0
        %1251 = vmatprep.subr.bf16.mxu0 0
        %1252 = vmatpush2.bf16.msra.mxu0 0
        %1253 = vmatprep.subr.bf16.mxu0 0
        %1254 = vmatpush2.bf16.msra.mxu0 0
        %1255 = vmatprep.subr.bf16.mxu0 0
        %1256 = vmatpush2.bf16.msra.mxu0 0
        %1257 = vmatprep.subr.bf16.mxu0 0
        %1258 = vmatpush2.bf16.msra.mxu0 0
        %1259 = vmatprep.subr.bf16.mxu0 0
        %1260 = vmatpush2.bf16.msra.mxu0 0
        %1261 = vmatprep.subr.bf16.mxu0 0
        %1262 = vmatpush2.bf16.msra.mxu0 0
        %1263 = vmatprep.mubr.bf16.mxu0 0
        %1264 = vmatmul.mubr.bf16.gmra.mxu0 %v1205
        %v1265 = vpop.f32.mrf.mxu0
        %v1266 = vadd.f32 %v844, %v1265
        %v1267 = vpop.f32.mrf.mxu0
        %v1268 = vpop.f32.mrf.mxu0
        %v1269 = vadd.f32 %v844, %v1268
        %v1270 = vpop.f32.mrf.mxu0
        %1271 = vmatprep.mubr.bf16.mxu0 0
        %1272 = vmatmul.mubr.bf16.gmra.mxu0 %v1208
        %v1273 = vpop.f32.mrf.mxu0
        %v1274 = vadd.f32 %v844, %v1273
        %v1275 = vpop.f32.mrf.mxu0
        %v1276 = vpop.f32.mrf.mxu0
        %v1277 = vadd.f32 %v844, %v1276
        %v1278 = vpop.f32.mrf.mxu0
        %1279 = vmatprep.mubr.bf16.mxu0 0
        %1280 = vmatmul.mubr.bf16.gmra.mxu0 %v1211
        %v1281 = vpop.f32.mrf.mxu0
        %v1282 = vadd.f32 %v844, %v1281
        %v1283 = vpop.f32.mrf.mxu0
        %v1284 = vpop.f32.mrf.mxu0
        %v1285 = vadd.f32 %v844, %v1284
        %v1286 = vpop.f32.mrf.mxu0
        %1287 = vmatprep.mubr.bf16.mxu0 0
        %1288 = vmatmul.mubr.bf16.gmra.mxu0 %v1214
        %v1289 = vpop.f32.mrf.mxu0
        %v1290 = vadd.f32 %v844, %v1289
        %v1291 = vpop.f32.mrf.mxu0
        %v1292 = vpop.f32.mrf.mxu0
        %v1293 = vadd.f32 %v844, %v1292
        %v1294 = vpop.f32.mrf.mxu0
        %1295 = vmatprep.mubr.bf16.mxu0 0
        %1296 = vmatmul.mubr.bf16.gmra.mxu0 %v1217
        %v1297 = vpop.f32.mrf.mxu0
        %v1298 = vadd.f32 %v844, %v1297
        %v1299 = vpop.f32.mrf.mxu0
        %v1300 = vpop.f32.mrf.mxu0
        %v1301 = vadd.f32 %v844, %v1300
        %v1302 = vpop.f32.mrf.mxu0
        %1303 = vmatprep.mubr.bf16.mxu0 0
        %1304 = vmatmul.mubr.bf16.gmra.mxu0 %v1220
        %v1305 = vpop.f32.mrf.mxu0
        %v1306 = vadd.f32 %v844, %v1305
        %v1307 = vpop.f32.mrf.mxu0
        %v1308 = vpop.f32.mrf.mxu0
        %v1309 = vadd.f32 %v844, %v1308
        %v1310 = vpop.f32.mrf.mxu0
        %1311 = vmatprep.mubr.bf16.mxu0 0
        %1312 = vmatmul.mubr.bf16.gmra.mxu0 %v1223
        %v1313 = vpop.f32.mrf.mxu0
        %v1314 = vadd.f32 %v844, %v1313
        %v1315 = vpop.f32.mrf.mxu0
        %v1316 = vpop.f32.mrf.mxu0
        %v1317 = vadd.f32 %v844, %v1316
        %v1318 = vpop.f32.mrf.mxu0
        %1319 = vmatprep.mubr.bf16.mxu0 0
        %1320 = vmatmul.mubr.bf16.gmra.mxu0 %v1226
        %v1321 = vpop.f32.mrf.mxu0
        %v1322 = vadd.f32 %v844, %v1321
        %v1323 = vpop.f32.mrf.mxu0
        %v1324 = vpop.f32.mrf.mxu0
        %v1325 = vadd.f32 %v844, %v1324
        %v1326 = vpop.f32.mrf.mxu0
        %1327 = vdwg.mxu0
        %1328 = vmax.xlane.f32.xlu0 %v1266
        %v1329 = vpop.xlane.xlu0 %1328
        %1330 = vmax.xlane.f32.xlu0 %v1269
        %v1331 = vpop.xlane.xlu0 %1330
        %1332 = vmax.xlane.f32.xlu0 %v1274
        %v1333 = vpop.xlane.xlu0 %1332
        %1334 = vmax.xlane.f32.xlu0 %v1277
        %v1335 = vpop.xlane.xlu0 %1334
        %1336 = vmax.xlane.f32.xlu0 %v1282
        %v1337 = vpop.xlane.xlu0 %1336
        %1338 = vmax.xlane.f32.xlu0 %v1285
        %v1339 = vpop.xlane.xlu0 %1338
        %1340 = vmax.xlane.f32.xlu0 %v1290
        %v1341 = vpop.xlane.xlu0 %1340
        %1342 = vmax.xlane.f32.xlu0 %v1293
        %v1343 = vpop.xlane.xlu0 %1342
        %1344 = vmax.xlane.f32.xlu0 %v1298
        %v1345 = vpop.xlane.xlu0 %1344
        %1346 = vmax.xlane.f32.xlu0 %v1301
        %v1347 = vpop.xlane.xlu0 %1346
        %1348 = vmax.xlane.f32.xlu0 %v1306
        %v1349 = vpop.xlane.xlu0 %1348
        %1350 = vmax.xlane.f32.xlu0 %v1309
        %v1351 = vpop.xlane.xlu0 %1350
        %1352 = vmax.xlane.f32.xlu0 %v1314
        %v1353 = vpop.xlane.xlu0 %1352
        %1354 = vmax.xlane.f32.xlu0 %v1317
        %v1355 = vpop.xlane.xlu0 %1354
        %1356 = vmax.xlane.f32.xlu0 %v1322
        %v1357 = vpop.xlane.xlu0 %1356
        %1358 = vmax.xlane.f32.xlu0 %v1325
        %v1359 = vpop.xlane.xlu0 %1358
        %v1360 = vsub.f32 %v1266, %v1329
        %v1361 = vsub.f32 %v1269, %v1331
        %v1362 = vsub.f32 %v1274, %v1333
        %v1363 = vsub.f32 %v1277, %v1335
        %v1364 = vsub.f32 %v1282, %v1337
        %v1365 = vsub.f32 %v1285, %v1339
        %v1366 = vsub.f32 %v1290, %v1341
        %v1367 = vsub.f32 %v1293, %v1343
        %v1368 = vsub.f32 %v1298, %v1345
        %v1369 = vsub.f32 %v1301, %v1347
        %v1370 = vsub.f32 %v1306, %v1349
        %v1371 = vsub.f32 %v1309, %v1351
        %v1372 = vsub.f32 %v1314, %v1353
        %v1373 = vsub.f32 %v1317, %v1355
        %v1374 = vsub.f32 %v1322, %v1357
        %v1375 = vsub.f32 %v1325, %v1359
        %v1376 = vmul.f32 %v1360, 1.442695
        %v1377 = vpow.pop %v1376
        %v1378 = vmul.f32 %v1361, 1.442695
        %v1379 = vpow.pop %v1378
        %v1380 = vmul.f32 %v1362, 1.442695
        %v1381 = vpow.pop %v1380
        %v1382 = vmul.f32 %v1363, 1.442695
        %v1383 = vpow.pop %v1382
        %v1384 = vmul.f32 %v1364, 1.442695
        %v1385 = vpow.pop %v1384
        %v1386 = vmul.f32 %v1365, 1.442695
        %v1387 = vpow.pop %v1386
        %v1388 = vmul.f32 %v1366, 1.442695
        %v1389 = vpow.pop %v1388
        %v1390 = vmul.f32 %v1367, 1.442695
        %v1391 = vpow.pop %v1390
        %v1392 = vmul.f32 %v1368, 1.442695
        %v1393 = vpow.pop %v1392
        %v1394 = vmul.f32 %v1369, 1.442695
        %v1395 = vpow.pop %v1394
        %v1396 = vmul.f32 %v1370, 1.442695
        %v1397 = vpow.pop %v1396
        %v1398 = vmul.f32 %v1371, 1.442695
        %v1399 = vpow.pop %v1398
        %v1400 = vmul.f32 %v1372, 1.442695
        %v1401 = vpow.pop %v1400
        %v1402 = vmul.f32 %v1373, 1.442695
        %v1403 = vpow.pop %v1402
        %v1404 = vmul.f32 %v1374, 1.442695
        %v1405 = vpow.pop %v1404
        %v1406 = vmul.f32 %v1375, 1.442695
        %v1407 = vpow.pop %v1406
        %1408 = vadd.xlane.f32.xlu0 %v1377
        %v1409 = vpop.xlane.xlu0 %1408
        %1410 = vadd.xlane.f32.xlu0 %v1379
        %v1411 = vpop.xlane.xlu0 %1410
        %1412 = vadd.xlane.f32.xlu0 %v1381
        %v1413 = vpop.xlane.xlu0 %1412
        %1414 = vadd.xlane.f32.xlu0 %v1383
        %v1415 = vpop.xlane.xlu0 %1414
        %1416 = vadd.xlane.f32.xlu0 %v1385
        %v1417 = vpop.xlane.xlu0 %1416
        %1418 = vadd.xlane.f32.xlu0 %v1387
        %v1419 = vpop.xlane.xlu0 %1418
        %1420 = vadd.xlane.f32.xlu0 %v1389
        %v1421 = vpop.xlane.xlu0 %1420
        %1422 = vadd.xlane.f32.xlu0 %v1391
        %v1423 = vpop.xlane.xlu0 %1422
        %1424 = vadd.xlane.f32.xlu0 %v1393
        %v1425 = vpop.xlane.xlu0 %1424
        %1426 = vadd.xlane.f32.xlu0 %v1395
        %v1427 = vpop.xlane.xlu0 %1426
        %1428 = vadd.xlane.f32.xlu0 %v1397
        %v1429 = vpop.xlane.xlu0 %1428
        %1430 = vadd.xlane.f32.xlu0 %v1399
        %v1431 = vpop.xlane.xlu0 %1430
        %1432 = vadd.xlane.f32.xlu0 %v1401
        %v1433 = vpop.xlane.xlu0 %1432
        %1434 = vadd.xlane.f32.xlu0 %v1403
        %v1435 = vpop.xlane.xlu0 %1434
        %1436 = vadd.xlane.f32.xlu0 %v1405
        %v1437 = vpop.xlane.xlu0 %1436
        %1438 = vadd.xlane.f32.xlu0 %v1407
        %v1439 = vpop.xlane.xlu0 %1438
        %v1440 = vrcp.pop %v1409
        %v1441 = vrcp.pop %v1411
        %v1442 = vrcp.pop %v1413
        %v1443 = vrcp.pop %v1415
        %v1444 = vrcp.pop %v1417
        %v1445 = vrcp.pop %v1419
        %v1446 = vrcp.pop %v1421
        %v1447 = vrcp.pop %v1423
        %v1448 = vrcp.pop %v1425
        %v1449 = vrcp.pop %v1427
        %v1450 = vrcp.pop %v1429
        %v1451 = vrcp.pop %v1431
        %v1452 = vrcp.pop %v1433
        %v1453 = vrcp.pop %v1435
        %v1454 = vrcp.pop %v1437
        %v1455 = vrcp.pop %v1439
        %v1456 = vmul.f32 %v1377, %v1440
        %v1457 = vmul.f32 %v1379, %v1441
        %v1458 = vmul.f32 %v1381, %v1442
        %v1459 = vmul.f32 %v1383, %v1443
        %v1460 = vmul.f32 %v1385, %v1444
        %v1461 = vmul.f32 %v1387, %v1445
        %v1462 = vmul.f32 %v1389, %v1446
        %v1463 = vmul.f32 %v1391, %v1447
        %v1464 = vmul.f32 %v1393, %v1448
        %v1465 = vmul.f32 %v1395, %v1449
        %v1466 = vmul.f32 %v1397, %v1450
        %v1467 = vmul.f32 %v1399, %v1451
        %v1468 = vmul.f32 %v1401, %v1452
        %v1469 = vmul.f32 %v1403, %v1453
        %v1470 = vmul.f32 %v1405, %v1454
        %v1471 = vmul.f32 %v1407, %v1455
        %v1472 = vpack.c.bf16 %v1457, %v1456
        %v1473 = vpack.c.bf16 %v1459, %v1458
        %v1474 = vpack.c.bf16 %v1461, %v1460
        %v1475 = vpack.c.bf16 %v1463, %v1462
        %v1476 = vpack.c.bf16 %v1465, %v1464
        %v1477 = vpack.c.bf16 %v1467, %v1466
        %v1478 = vpack.c.bf16 %v1469, %v1468
        %v1479 = vpack.c.bf16 %v1471, %v1470
        %1480 = vmatprep.subr.bf16.mxu0 0
        %1481 = vmatpush1.bf16.xpose.msra.mxu0 %v1479
        %1482 = vmatprep.subr.bf16.mxu0 0
        %1483 = vmatpush1.bf16.xpose.msra.mxu0 %v1478
        %1484 = vmatprep.subr.bf16.mxu0 0
        %1485 = vmatpush1.bf16.xpose.msra.mxu0 %v1477
        %1486 = vmatprep.subr.bf16.mxu0 0
        %1487 = vmatpush1.bf16.xpose.msra.mxu0 %v1476
        %1488 = vmatprep.subr.bf16.mxu0 0
        %1489 = vmatpush1.bf16.xpose.msra.mxu0 %v1475
        %1490 = vmatprep.subr.bf16.mxu0 0
        %1491 = vmatpush1.bf16.xpose.msra.mxu0 %v1474
        %1492 = vmatprep.subr.bf16.mxu0 0
        %1493 = vmatpush1.bf16.xpose.msra.mxu0 %v1473
        %1494 = vmatprep.subr.bf16.mxu0 0
        %1495 = vmatpush1.bf16.xpose.msra.mxu0 %v1472
        %1496 = vmatprep.subr.bf16.mxu0 0
        %1497 = vmatpush2.bf16.xpose.msra.mxu0 0
        %1498 = vmatprep.subr.bf16.mxu0 0
        %1499 = vmatpush2.bf16.xpose.msra.mxu0 0
        %1500 = vmatprep.subr.bf16.mxu0 0
        %1501 = vmatpush2.bf16.xpose.msra.mxu0 0
        %1502 = vmatprep.subr.bf16.mxu0 0
        %1503 = vmatpush2.bf16.xpose.msra.mxu0 0
        %1504 = vmatprep.subr.bf16.mxu0 0
        %1505 = vmatpush2.bf16.xpose.msra.mxu0 0
        %1506 = vmatprep.subr.bf16.mxu0 0
        %1507 = vmatpush2.bf16.xpose.msra.mxu0 0
        %1508 = vmatprep.subr.bf16.mxu0 0
        %1509 = vmatpush2.bf16.xpose.msra.mxu0 0
        %1510 = vmatprep.subr.bf16.mxu0 0
        %1511 = vmatpush2.bf16.xpose.msra.mxu0 0
        %1512 = vmatprep.mubr.bf16.mxu0 0
        %1513 = vmatmul.mubr.bf16.gmra.mxu0 %v1184
        %v1514 = vpop.f32.mrf.mxu0
        %v1515 = vadd.f32 0.0, %v1514
        %v1516 = vpop.f32.mrf.mxu0
        %v1517 = vpop.f32.mrf.mxu0
        %v1518 = vpop.f32.mrf.mxu0
        %1519 = vdwg.mxu0
        %v1520 = vpack.c.bf16 %v1515, %v1515
        %1521 = vst [vmem:[#allocation4 + $0x4] sm:$0xf] %v1520
        %v1522 = vld [vmem:[#allocation2 + $0x8] sm:$0xf]
        %v1523 = vld [vmem:[#allocation3 + $0x8] sm:$0xf]
        %1524 = vxpose.xlu0.c.b16.start [1/8] %v840, 128
        %1525 = vxpose.xlu0.c.b16.cont [2/8] 0, 128
        %1526 = vxpose.xlu0.c.b16.cont [3/8] 0, 128
        %1527 = vxpose.xlu0.c.b16.cont [4/8] 0, 128
        %1528 = vxpose.xlu0.c.b16.cont [5/8] 0, 128
        %1529 = vxpose.xlu0.c.b16.cont [6/8] 0, 128
        %1530 = vxpose.xlu0.c.b16.cont [7/8] 0, 128
        %1531 = vxpose.xlu0.c.b16.end [8/8] 0, 128
        %v1532 = vpop.trf.xlu0
        %v1533 = vpop.trf.xlu0
        %v1534 = vpop.trf.xlu0
        %v1535 = vpop.trf.xlu0
        %v1536 = vpop.trf.xlu0
        %v1537 = vpop.trf.xlu0
        %v1538 = vpop.trf.xlu0
        %v1539 = vpop.trf.xlu0
        %v1541 = vsel %vm863, %v1532, 0
        %v1544 = vsel %vm863, %v1533, 0
        %v1547 = vsel %vm863, %v1534, 0
        %v1550 = vsel %vm863, %v1535, 0
        %v1553 = vsel %vm863, %v1536, 0
        %v1556 = vsel %vm863, %v1537, 0
        %v1559 = vsel %vm863, %v1538, 0
        %v1562 = vsel %vm863, %v1539, 0
        %v1565 = vsel %vm888, %v1522, 0
        %1567 = vmatprep.subr.bf16.mxu0 0
        %1568 = vmatpush1.bf16.msra.mxu0 0
        %1569 = vmatprep.subr.bf16.mxu0 0
        %1570 = vmatpush1.bf16.msra.mxu0 0
        %1571 = vmatprep.subr.bf16.mxu0 0
        %1572 = vmatpush1.bf16.msra.mxu0 0
        %1573 = vmatprep.subr.bf16.mxu0 0
        %1574 = vmatpush1.bf16.msra.mxu0 0
        %1575 = vmatprep.subr.bf16.mxu0 0
        %1576 = vmatpush1.bf16.msra.mxu0 0
        %1577 = vmatprep.subr.bf16.mxu0 0
        %1578 = vmatpush1.bf16.msra.mxu0 0
        %1579 = vmatprep.subr.bf16.mxu0 0
        %1580 = vmatpush1.bf16.msra.mxu0 0
        %1581 = vmatprep.subr.bf16.mxu0 0
        %1582 = vmatpush1.bf16.msra.mxu0 %v1565
        %1583 = vmatprep.subr.bf16.mxu0 0
        %1584 = vmatpush2.bf16.msra.mxu0 0
        %1585 = vmatprep.subr.bf16.mxu0 0
        %1586 = vmatpush2.bf16.msra.mxu0 0
        %1587 = vmatprep.subr.bf16.mxu0 0
        %1588 = vmatpush2.bf16.msra.mxu0 0
        %1589 = vmatprep.subr.bf16.mxu0 0
        %1590 = vmatpush2.bf16.msra.mxu0 0
        %1591 = vmatprep.subr.bf16.mxu0 0
        %1592 = vmatpush2.bf16.msra.mxu0 0
        %1593 = vmatprep.subr.bf16.mxu0 0
        %1594 = vmatpush2.bf16.msra.mxu0 0
        %1595 = vmatprep.subr.bf16.mxu0 0
        %1596 = vmatpush2.bf16.msra.mxu0 0
        %1597 = vmatprep.subr.bf16.mxu0 0
        %1598 = vmatpush2.bf16.msra.mxu0 0
        %1599 = vmatprep.mubr.bf16.mxu0 0
        %1600 = vmatmul.mubr.bf16.gmra.mxu0 %v1541
        %v1601 = vpop.f32.mrf.mxu0
        %v1602 = vadd.f32 %v844, %v1601
        %v1603 = vpop.f32.mrf.mxu0
        %v1604 = vpop.f32.mrf.mxu0
        %v1605 = vadd.f32 %v844, %v1604
        %v1606 = vpop.f32.mrf.mxu0
        %1607 = vmatprep.mubr.bf16.mxu0 0
        %1608 = vmatmul.mubr.bf16.gmra.mxu0 %v1544
        %v1609 = vpop.f32.mrf.mxu0
        %v1610 = vadd.f32 %v844, %v1609
        %v1611 = vpop.f32.mrf.mxu0
        %v1612 = vpop.f32.mrf.mxu0
        %v1613 = vadd.f32 %v844, %v1612
        %v1614 = vpop.f32.mrf.mxu0
        %1615 = vmatprep.mubr.bf16.mxu0 0
        %1616 = vmatmul.mubr.bf16.gmra.mxu0 %v1547
        %v1617 = vpop.f32.mrf.mxu0
        %v1618 = vadd.f32 %v844, %v1617
        %v1619 = vpop.f32.mrf.mxu0
        %v1620 = vpop.f32.mrf.mxu0
        %v1621 = vadd.f32 %v844, %v1620
        %v1622 = vpop.f32.mrf.mxu0
        %1623 = vmatprep.mubr.bf16.mxu0 0
        %1624 = vmatmul.mubr.bf16.gmra.mxu0 %v1550
        %v1625 = vpop.f32.mrf.mxu0
        %v1626 = vadd.f32 %v844, %v1625
        %v1627 = vpop.f32.mrf.mxu0
        %v1628 = vpop.f32.mrf.mxu0
        %v1629 = vadd.f32 %v844, %v1628
        %v1630 = vpop.f32.mrf.mxu0
        %1631 = vmatprep.mubr.bf16.mxu0 0
        %1632 = vmatmul.mubr.bf16.gmra.mxu0 %v1553
        %v1633 = vpop.f32.mrf.mxu0
        %v1634 = vadd.f32 %v844, %v1633
        %v1635 = vpop.f32.mrf.mxu0
        %v1636 = vpop.f32.mrf.mxu0
        %v1637 = vadd.f32 %v844, %v1636
        %v1638 = vpop.f32.mrf.mxu0
        %1639 = vmatprep.mubr.bf16.mxu0 0
        %1640 = vmatmul.mubr.bf16.gmra.mxu0 %v1556
        %v1641 = vpop.f32.mrf.mxu0
        %v1642 = vadd.f32 %v844, %v1641
        %v1643 = vpop.f32.mrf.mxu0
        %v1644 = vpop.f32.mrf.mxu0
        %v1645 = vadd.f32 %v844, %v1644
        %v1646 = vpop.f32.mrf.mxu0
        %1647 = vmatprep.mubr.bf16.mxu0 0
        %1648 = vmatmul.mubr.bf16.gmra.mxu0 %v1559
        %v1649 = vpop.f32.mrf.mxu0
        %v1650 = vadd.f32 %v844, %v1649
        %v1651 = vpop.f32.mrf.mxu0
        %v1652 = vpop.f32.mrf.mxu0
        %v1653 = vadd.f32 %v844, %v1652
        %v1654 = vpop.f32.mrf.mxu0
        %1655 = vmatprep.mubr.bf16.mxu0 0
        %1656 = vmatmul.mubr.bf16.gmra.mxu0 %v1562
        %v1657 = vpop.f32.mrf.mxu0
        %v1658 = vadd.f32 %v844, %v1657
        %v1659 = vpop.f32.mrf.mxu0
        %v1660 = vpop.f32.mrf.mxu0
        %v1661 = vadd.f32 %v844, %v1660
        %v1662 = vpop.f32.mrf.mxu0
        %1663 = vdwg.mxu0
        %1664 = vmax.xlane.f32.xlu0 %v1602
        %v1665 = vpop.xlane.xlu0 %1664
        %1666 = vmax.xlane.f32.xlu0 %v1605
        %v1667 = vpop.xlane.xlu0 %1666
        %1668 = vmax.xlane.f32.xlu0 %v1610
        %v1669 = vpop.xlane.xlu0 %1668
        %1670 = vmax.xlane.f32.xlu0 %v1613
        %v1671 = vpop.xlane.xlu0 %1670
        %1672 = vmax.xlane.f32.xlu0 %v1618
        %v1673 = vpop.xlane.xlu0 %1672
        %1674 = vmax.xlane.f32.xlu0 %v1621
        %v1675 = vpop.xlane.xlu0 %1674
        %1676 = vmax.xlane.f32.xlu0 %v1626
        %v1677 = vpop.xlane.xlu0 %1676
        %1678 = vmax.xlane.f32.xlu0 %v1629
        %v1679 = vpop.xlane.xlu0 %1678
        %1680 = vmax.xlane.f32.xlu0 %v1634
        %v1681 = vpop.xlane.xlu0 %1680
        %1682 = vmax.xlane.f32.xlu0 %v1637
        %v1683 = vpop.xlane.xlu0 %1682
        %1684 = vmax.xlane.f32.xlu0 %v1642
        %v1685 = vpop.xlane.xlu0 %1684
        %1686 = vmax.xlane.f32.xlu0 %v1645
        %v1687 = vpop.xlane.xlu0 %1686
        %1688 = vmax.xlane.f32.xlu0 %v1650
        %v1689 = vpop.xlane.xlu0 %1688
        %1690 = vmax.xlane.f32.xlu0 %v1653
        %v1691 = vpop.xlane.xlu0 %1690
        %1692 = vmax.xlane.f32.xlu0 %v1658
        %v1693 = vpop.xlane.xlu0 %1692
        %1694 = vmax.xlane.f32.xlu0 %v1661
        %v1695 = vpop.xlane.xlu0 %1694
        %v1696 = vsub.f32 %v1602, %v1665
        %v1697 = vsub.f32 %v1605, %v1667
        %v1698 = vsub.f32 %v1610, %v1669
        %v1699 = vsub.f32 %v1613, %v1671
        %v1700 = vsub.f32 %v1618, %v1673
        %v1701 = vsub.f32 %v1621, %v1675
        %v1702 = vsub.f32 %v1626, %v1677
        %v1703 = vsub.f32 %v1629, %v1679
        %v1704 = vsub.f32 %v1634, %v1681
        %v1705 = vsub.f32 %v1637, %v1683
        %v1706 = vsub.f32 %v1642, %v1685
        %v1707 = vsub.f32 %v1645, %v1687
        %v1708 = vsub.f32 %v1650, %v1689
        %v1709 = vsub.f32 %v1653, %v1691
        %v1710 = vsub.f32 %v1658, %v1693
        %v1711 = vsub.f32 %v1661, %v1695
        %v1712 = vmul.f32 %v1696, 1.442695
        %v1713 = vpow.pop %v1712
        %v1714 = vmul.f32 %v1697, 1.442695
        %v1715 = vpow.pop %v1714
        %v1716 = vmul.f32 %v1698, 1.442695
        %v1717 = vpow.pop %v1716
        %v1718 = vmul.f32 %v1699, 1.442695
        %v1719 = vpow.pop %v1718
        %v1720 = vmul.f32 %v1700, 1.442695
        %v1721 = vpow.pop %v1720
        %v1722 = vmul.f32 %v1701, 1.442695
        %v1723 = vpow.pop %v1722
        %v1724 = vmul.f32 %v1702, 1.442695
        %v1725 = vpow.pop %v1724
        %v1726 = vmul.f32 %v1703, 1.442695
        %v1727 = vpow.pop %v1726
        %v1728 = vmul.f32 %v1704, 1.442695
        %v1729 = vpow.pop %v1728
        %v1730 = vmul.f32 %v1705, 1.442695
        %v1731 = vpow.pop %v1730
        %v1732 = vmul.f32 %v1706, 1.442695
        %v1733 = vpow.pop %v1732
        %v1734 = vmul.f32 %v1707, 1.442695
        %v1735 = vpow.pop %v1734
        %v1736 = vmul.f32 %v1708, 1.442695
        %v1737 = vpow.pop %v1736
        %v1738 = vmul.f32 %v1709, 1.442695
        %v1739 = vpow.pop %v1738
        %v1740 = vmul.f32 %v1710, 1.442695
        %v1741 = vpow.pop %v1740
        %v1742 = vmul.f32 %v1711, 1.442695
        %v1743 = vpow.pop %v1742
        %1744 = vadd.xlane.f32.xlu0 %v1713
        %v1745 = vpop.xlane.xlu0 %1744
        %1746 = vadd.xlane.f32.xlu0 %v1715
        %v1747 = vpop.xlane.xlu0 %1746
        %1748 = vadd.xlane.f32.xlu0 %v1717
        %v1749 = vpop.xlane.xlu0 %1748
        %1750 = vadd.xlane.f32.xlu0 %v1719
        %v1751 = vpop.xlane.xlu0 %1750
        %1752 = vadd.xlane.f32.xlu0 %v1721
        %v1753 = vpop.xlane.xlu0 %1752
        %1754 = vadd.xlane.f32.xlu0 %v1723
        %v1755 = vpop.xlane.xlu0 %1754
        %1756 = vadd.xlane.f32.xlu0 %v1725
        %v1757 = vpop.xlane.xlu0 %1756
        %1758 = vadd.xlane.f32.xlu0 %v1727
        %v1759 = vpop.xlane.xlu0 %1758
        %1760 = vadd.xlane.f32.xlu0 %v1729
        %v1761 = vpop.xlane.xlu0 %1760
        %1762 = vadd.xlane.f32.xlu0 %v1731
        %v1763 = vpop.xlane.xlu0 %1762
        %1764 = vadd.xlane.f32.xlu0 %v1733
        %v1765 = vpop.xlane.xlu0 %1764
        %1766 = vadd.xlane.f32.xlu0 %v1735
        %v1767 = vpop.xlane.xlu0 %1766
        %1768 = vadd.xlane.f32.xlu0 %v1737
        %v1769 = vpop.xlane.xlu0 %1768
        %1770 = vadd.xlane.f32.xlu0 %v1739
        %v1771 = vpop.xlane.xlu0 %1770
        %1772 = vadd.xlane.f32.xlu0 %v1741
        %v1773 = vpop.xlane.xlu0 %1772
        %1774 = vadd.xlane.f32.xlu0 %v1743
        %v1775 = vpop.xlane.xlu0 %1774
        %v1776 = vrcp.pop %v1745
        %v1777 = vrcp.pop %v1747
        %v1778 = vrcp.pop %v1749
        %v1779 = vrcp.pop %v1751
        %v1780 = vrcp.pop %v1753
        %v1781 = vrcp.pop %v1755
        %v1782 = vrcp.pop %v1757
        %v1783 = vrcp.pop %v1759
        %v1784 = vrcp.pop %v1761
        %v1785 = vrcp.pop %v1763
        %v1786 = vrcp.pop %v1765
        %v1787 = vrcp.pop %v1767
        %v1788 = vrcp.pop %v1769
        %v1789 = vrcp.pop %v1771
        %v1790 = vrcp.pop %v1773
        %v1791 = vrcp.pop %v1775
        %v1792 = vmul.f32 %v1713, %v1776
        %v1793 = vmul.f32 %v1715, %v1777
        %v1794 = vmul.f32 %v1717, %v1778
        %v1795 = vmul.f32 %v1719, %v1779
        %v1796 = vmul.f32 %v1721, %v1780
        %v1797 = vmul.f32 %v1723, %v1781
        %v1798 = vmul.f32 %v1725, %v1782
        %v1799 = vmul.f32 %v1727, %v1783
        %v1800 = vmul.f32 %v1729, %v1784
        %v1801 = vmul.f32 %v1731, %v1785
        %v1802 = vmul.f32 %v1733, %v1786
        %v1803 = vmul.f32 %v1735, %v1787
        %v1804 = vmul.f32 %v1737, %v1788
        %v1805 = vmul.f32 %v1739, %v1789
        %v1806 = vmul.f32 %v1741, %v1790
        %v1807 = vmul.f32 %v1743, %v1791
        %v1808 = vpack.c.bf16 %v1793, %v1792
        %v1809 = vpack.c.bf16 %v1795, %v1794
        %v1810 = vpack.c.bf16 %v1797, %v1796
        %v1811 = vpack.c.bf16 %v1799, %v1798
        %v1812 = vpack.c.bf16 %v1801, %v1800
        %v1813 = vpack.c.bf16 %v1803, %v1802
        %v1814 = vpack.c.bf16 %v1805, %v1804
        %v1815 = vpack.c.bf16 %v1807, %v1806
        %1816 = vmatprep.subr.bf16.mxu0 0
        %1817 = vmatpush1.bf16.xpose.msra.mxu0 %v1815
        %1818 = vmatprep.subr.bf16.mxu0 0
        %1819 = vmatpush1.bf16.xpose.msra.mxu0 %v1814
        %1820 = vmatprep.subr.bf16.mxu0 0
        %1821 = vmatpush1.bf16.xpose.msra.mxu0 %v1813
        %1822 = vmatprep.subr.bf16.mxu0 0
        %1823 = vmatpush1.bf16.xpose.msra.mxu0 %v1812
        %1824 = vmatprep.subr.bf16.mxu0 0
        %1825 = vmatpush1.bf16.xpose.msra.mxu0 %v1811
        %1826 = vmatprep.subr.bf16.mxu0 0
        %1827 = vmatpush1.bf16.xpose.msra.mxu0 %v1810
        %1828 = vmatprep.subr.bf16.mxu0 0
        %1829 = vmatpush1.bf16.xpose.msra.mxu0 %v1809
        %1830 = vmatprep.subr.bf16.mxu0 0
        %1831 = vmatpush1.bf16.xpose.msra.mxu0 %v1808
        %1832 = vmatprep.subr.bf16.mxu0 0
        %1833 = vmatpush2.bf16.xpose.msra.mxu0 0
        %1834 = vmatprep.subr.bf16.mxu0 0
        %1835 = vmatpush2.bf16.xpose.msra.mxu0 0
        %1836 = vmatprep.subr.bf16.mxu0 0
        %1837 = vmatpush2.bf16.xpose.msra.mxu0 0
        %1838 = vmatprep.subr.bf16.mxu0 0
        %1839 = vmatpush2.bf16.xpose.msra.mxu0 0
        %1840 = vmatprep.subr.bf16.mxu0 0
        %1841 = vmatpush2.bf16.xpose.msra.mxu0 0
        %1842 = vmatprep.subr.bf16.mxu0 0
        %1843 = vmatpush2.bf16.xpose.msra.mxu0 0
        %1844 = vmatprep.subr.bf16.mxu0 0
        %1845 = vmatpush2.bf16.xpose.msra.mxu0 0
        %1846 = vmatprep.subr.bf16.mxu0 0
        %1847 = vmatpush2.bf16.xpose.msra.mxu0 0
        %1848 = vmatprep.mubr.bf16.mxu0 0
        %1849 = vmatmul.mubr.bf16.gmra.mxu0 %v1523
        %v1850 = vpop.f32.mrf.mxu0
        %v1851 = vadd.f32 0.0, %v1850
        %v1852 = vpop.f32.mrf.mxu0
        %v1853 = vpop.f32.mrf.mxu0
        %v1854 = vpop.f32.mrf.mxu0
        %1855 = vdwg.mxu0
        %v1856 = vpack.c.bf16 %v1851, %v1851
        %1857 = vst [vmem:[#allocation4 + $0x8] sm:$0xf] %v1856
        %v1858 = vld [vmem:[#allocation2 + $0xc] sm:$0xf]
        %v1859 = vld [vmem:[#allocation3 + $0xc] sm:$0xf]
        %v1861 = vrot.slane %v840, 4
        %1863 = vxpose.xlu0.c.b16.start [1/8] %v1861, 128
        %1864 = vxpose.xlu0.c.b16.cont [2/8] 0, 128
        %1865 = vxpose.xlu0.c.b16.cont [3/8] 0, 128
        %1866 = vxpose.xlu0.c.b16.cont [4/8] 0, 128
        %1867 = vxpose.xlu0.c.b16.cont [5/8] 0, 128
        %1868 = vxpose.xlu0.c.b16.cont [6/8] 0, 128
        %1869 = vxpose.xlu0.c.b16.cont [7/8] 0, 128
        %1870 = vxpose.xlu0.c.b16.end [8/8] 0, 128
        %v1871 = vpop.trf.xlu0
        %v1872 = vpop.trf.xlu0
        %v1873 = vpop.trf.xlu0
        %v1874 = vpop.trf.xlu0
        %v1875 = vpop.trf.xlu0
        %v1876 = vpop.trf.xlu0
        %v1877 = vpop.trf.xlu0
        %v1878 = vpop.trf.xlu0
        %v1880 = vsel %vm863, %v1871, 0
        %v1883 = vsel %vm863, %v1872, 0
        %v1886 = vsel %vm863, %v1873, 0
        %v1889 = vsel %vm863, %v1874, 0
        %v1892 = vsel %vm863, %v1875, 0
        %v1895 = vsel %vm863, %v1876, 0
        %v1898 = vsel %vm863, %v1877, 0
        %v1901 = vsel %vm863, %v1878, 0
        %v1904 = vsel %vm888, %v1858, 0
        %1906 = vmatprep.subr.bf16.mxu0 0
        %1907 = vmatpush1.bf16.msra.mxu0 0
        %1908 = vmatprep.subr.bf16.mxu0 0
        %1909 = vmatpush1.bf16.msra.mxu0 0
        %1910 = vmatprep.subr.bf16.mxu0 0
        %1911 = vmatpush1.bf16.msra.mxu0 0
        %1912 = vmatprep.subr.bf16.mxu0 0
        %1913 = vmatpush1.bf16.msra.mxu0 0
        %1914 = vmatprep.subr.bf16.mxu0 0
        %1915 = vmatpush1.bf16.msra.mxu0 0
        %1916 = vmatprep.subr.bf16.mxu0 0
        %1917 = vmatpush1.bf16.msra.mxu0 0
        %1918 = vmatprep.subr.bf16.mxu0 0
        %1919 = vmatpush1.bf16.msra.mxu0 0
        %1920 = vmatprep.subr.bf16.mxu0 0
        %1921 = vmatpush1.bf16.msra.mxu0 %v1904
        %1922 = vmatprep.subr.bf16.mxu0 0
        %1923 = vmatpush2.bf16.msra.mxu0 0
        %1924 = vmatprep.subr.bf16.mxu0 0
        %1925 = vmatpush2.bf16.msra.mxu0 0
        %1926 = vmatprep.subr.bf16.mxu0 0
        %1927 = vmatpush2.bf16.msra.mxu0 0
        %1928 = vmatprep.subr.bf16.mxu0 0
        %1929 = vmatpush2.bf16.msra.mxu0 0
        %1930 = vmatprep.subr.bf16.mxu0 0
        %1931 = vmatpush2.bf16.msra.mxu0 0
        %1932 = vmatprep.subr.bf16.mxu0 0
        %1933 = vmatpush2.bf16.msra.mxu0 0
        %1934 = vmatprep.subr.bf16.mxu0 0
        %1935 = vmatpush2.bf16.msra.mxu0 0
        %1936 = vmatprep.subr.bf16.mxu0 0
        %1937 = vmatpush2.bf16.msra.mxu0 0
        %1938 = vmatprep.mubr.bf16.mxu0 0
        %1939 = vmatmul.mubr.bf16.gmra.mxu0 %v1880
        %v1940 = vpop.f32.mrf.mxu0
        %v1941 = vadd.f32 %v844, %v1940
        %v1942 = vpop.f32.mrf.mxu0
        %v1943 = vpop.f32.mrf.mxu0
        %v1944 = vadd.f32 %v844, %v1943
        %v1945 = vpop.f32.mrf.mxu0
        %1946 = vmatprep.mubr.bf16.mxu0 0
        %1947 = vmatmul.mubr.bf16.gmra.mxu0 %v1883
        %v1948 = vpop.f32.mrf.mxu0
        %v1949 = vadd.f32 %v844, %v1948
        %v1950 = vpop.f32.mrf.mxu0
        %v1951 = vpop.f32.mrf.mxu0
        %v1952 = vadd.f32 %v844, %v1951
        %v1953 = vpop.f32.mrf.mxu0
        %1954 = vmatprep.mubr.bf16.mxu0 0
        %1955 = vmatmul.mubr.bf16.gmra.mxu0 %v1886
        %v1956 = vpop.f32.mrf.mxu0
        %v1957 = vadd.f32 %v844, %v1956
        %v1958 = vpop.f32.mrf.mxu0
        %v1959 = vpop.f32.mrf.mxu0
        %v1960 = vadd.f32 %v844, %v1959
        %v1961 = vpop.f32.mrf.mxu0
        %1962 = vmatprep.mubr.bf16.mxu0 0
        %1963 = vmatmul.mubr.bf16.gmra.mxu0 %v1889
        %v1964 = vpop.f32.mrf.mxu0
        %v1965 = vadd.f32 %v844, %v1964
        %v1966 = vpop.f32.mrf.mxu0
        %v1967 = vpop.f32.mrf.mxu0
        %v1968 = vadd.f32 %v844, %v1967
        %v1969 = vpop.f32.mrf.mxu0
        %1970 = vmatprep.mubr.bf16.mxu0 0
        %1971 = vmatmul.mubr.bf16.gmra.mxu0 %v1892
        %v1972 = vpop.f32.mrf.mxu0
        %v1973 = vadd.f32 %v844, %v1972
        %v1974 = vpop.f32.mrf.mxu0
        %v1975 = vpop.f32.mrf.mxu0
        %v1976 = vadd.f32 %v844, %v1975
        %v1977 = vpop.f32.mrf.mxu0
        %1978 = vmatprep.mubr.bf16.mxu0 0
        %1979 = vmatmul.mubr.bf16.gmra.mxu0 %v1895
        %v1980 = vpop.f32.mrf.mxu0
        %v1981 = vadd.f32 %v844, %v1980
        %v1982 = vpop.f32.mrf.mxu0
        %v1983 = vpop.f32.mrf.mxu0
        %v1984 = vadd.f32 %v844, %v1983
        %v1985 = vpop.f32.mrf.mxu0
        %1986 = vmatprep.mubr.bf16.mxu0 0
        %1987 = vmatmul.mubr.bf16.gmra.mxu0 %v1898
        %v1988 = vpop.f32.mrf.mxu0
        %v1989 = vadd.f32 %v844, %v1988
        %v1990 = vpop.f32.mrf.mxu0
        %v1991 = vpop.f32.mrf.mxu0
        %v1992 = vadd.f32 %v844, %v1991
        %v1993 = vpop.f32.mrf.mxu0
        %1994 = vmatprep.mubr.bf16.mxu0 0
        %1995 = vmatmul.mubr.bf16.gmra.mxu0 %v1901
        %v1996 = vpop.f32.mrf.mxu0
        %v1997 = vadd.f32 %v844, %v1996
        %v1998 = vpop.f32.mrf.mxu0
        %v1999 = vpop.f32.mrf.mxu0
        %v2000 = vadd.f32 %v844, %v1999
        %v2001 = vpop.f32.mrf.mxu0
        %2002 = vdwg.mxu0
        %2003 = vmax.xlane.f32.xlu0 %v1941
        %v2004 = vpop.xlane.xlu0 %2003
        %2005 = vmax.xlane.f32.xlu0 %v1944
        %v2006 = vpop.xlane.xlu0 %2005
        %2007 = vmax.xlane.f32.xlu0 %v1949
        %v2008 = vpop.xlane.xlu0 %2007
        %2009 = vmax.xlane.f32.xlu0 %v1952
        %v2010 = vpop.xlane.xlu0 %2009
        %2011 = vmax.xlane.f32.xlu0 %v1957
        %v2012 = vpop.xlane.xlu0 %2011
        %2013 = vmax.xlane.f32.xlu0 %v1960
        %v2014 = vpop.xlane.xlu0 %2013
        %2015 = vmax.xlane.f32.xlu0 %v1965
        %v2016 = vpop.xlane.xlu0 %2015
        %2017 = vmax.xlane.f32.xlu0 %v1968
        %v2018 = vpop.xlane.xlu0 %2017
        %2019 = vmax.xlane.f32.xlu0 %v1973
        %v2020 = vpop.xlane.xlu0 %2019
        %2021 = vmax.xlane.f32.xlu0 %v1976
        %v2022 = vpop.xlane.xlu0 %2021
        %2023 = vmax.xlane.f32.xlu0 %v1981
        %v2024 = vpop.xlane.xlu0 %2023
        %2025 = vmax.xlane.f32.xlu0 %v1984
        %v2026 = vpop.xlane.xlu0 %2025
        %2027 = vmax.xlane.f32.xlu0 %v1989
        %v2028 = vpop.xlane.xlu0 %2027
        %2029 = vmax.xlane.f32.xlu0 %v1992
        %v2030 = vpop.xlane.xlu0 %2029
        %2031 = vmax.xlane.f32.xlu0 %v1997
        %v2032 = vpop.xlane.xlu0 %2031
        %2033 = vmax.xlane.f32.xlu0 %v2000
        %v2034 = vpop.xlane.xlu0 %2033
        %v2035 = vsub.f32 %v1941, %v2004
        %v2036 = vsub.f32 %v1944, %v2006
        %v2037 = vsub.f32 %v1949, %v2008
        %v2038 = vsub.f32 %v1952, %v2010
        %v2039 = vsub.f32 %v1957, %v2012
        %v2040 = vsub.f32 %v1960, %v2014
        %v2041 = vsub.f32 %v1965, %v2016
        %v2042 = vsub.f32 %v1968, %v2018
        %v2043 = vsub.f32 %v1973, %v2020
        %v2044 = vsub.f32 %v1976, %v2022
        %v2045 = vsub.f32 %v1981, %v2024
        %v2046 = vsub.f32 %v1984, %v2026
        %v2047 = vsub.f32 %v1989, %v2028
        %v2048 = vsub.f32 %v1992, %v2030
        %v2049 = vsub.f32 %v1997, %v2032
        %v2050 = vsub.f32 %v2000, %v2034
        %v2051 = vmul.f32 %v2035, 1.442695
        %v2052 = vpow.pop %v2051
        %v2053 = vmul.f32 %v2036, 1.442695
        %v2054 = vpow.pop %v2053
        %v2055 = vmul.f32 %v2037, 1.442695
        %v2056 = vpow.pop %v2055
        %v2057 = vmul.f32 %v2038, 1.442695
        %v2058 = vpow.pop %v2057
        %v2059 = vmul.f32 %v2039, 1.442695
        %v2060 = vpow.pop %v2059
        %v2061 = vmul.f32 %v2040, 1.442695
        %v2062 = vpow.pop %v2061
        %v2063 = vmul.f32 %v2041, 1.442695
        %v2064 = vpow.pop %v2063
        %v2065 = vmul.f32 %v2042, 1.442695
        %v2066 = vpow.pop %v2065
        %v2067 = vmul.f32 %v2043, 1.442695
        %v2068 = vpow.pop %v2067
        %v2069 = vmul.f32 %v2044, 1.442695
        %v2070 = vpow.pop %v2069
        %v2071 = vmul.f32 %v2045, 1.442695
        %v2072 = vpow.pop %v2071
        %v2073 = vmul.f32 %v2046, 1.442695
        %v2074 = vpow.pop %v2073
        %v2075 = vmul.f32 %v2047, 1.442695
        %v2076 = vpow.pop %v2075
        %v2077 = vmul.f32 %v2048, 1.442695
        %v2078 = vpow.pop %v2077
        %v2079 = vmul.f32 %v2049, 1.442695
        %v2080 = vpow.pop %v2079
        %v2081 = vmul.f32 %v2050, 1.442695
        %v2082 = vpow.pop %v2081
        %2083 = vadd.xlane.f32.xlu0 %v2052
        %v2084 = vpop.xlane.xlu0 %2083
        %2085 = vadd.xlane.f32.xlu0 %v2054
        %v2086 = vpop.xlane.xlu0 %2085
        %2087 = vadd.xlane.f32.xlu0 %v2056
        %v2088 = vpop.xlane.xlu0 %2087
        %2089 = vadd.xlane.f32.xlu0 %v2058
        %v2090 = vpop.xlane.xlu0 %2089
        %2091 = vadd.xlane.f32.xlu0 %v2060
        %v2092 = vpop.xlane.xlu0 %2091
        %2093 = vadd.xlane.f32.xlu0 %v2062
        %v2094 = vpop.xlane.xlu0 %2093
        %2095 = vadd.xlane.f32.xlu0 %v2064
        %v2096 = vpop.xlane.xlu0 %2095
        %2097 = vadd.xlane.f32.xlu0 %v2066
        %v2098 = vpop.xlane.xlu0 %2097
        %2099 = vadd.xlane.f32.xlu0 %v2068
        %v2100 = vpop.xlane.xlu0 %2099
        %2101 = vadd.xlane.f32.xlu0 %v2070
        %v2102 = vpop.xlane.xlu0 %2101
        %2103 = vadd.xlane.f32.xlu0 %v2072
        %v2104 = vpop.xlane.xlu0 %2103
        %2105 = vadd.xlane.f32.xlu0 %v2074
        %v2106 = vpop.xlane.xlu0 %2105
        %2107 = vadd.xlane.f32.xlu0 %v2076
        %v2108 = vpop.xlane.xlu0 %2107
        %2109 = vadd.xlane.f32.xlu0 %v2078
        %v2110 = vpop.xlane.xlu0 %2109
        %2111 = vadd.xlane.f32.xlu0 %v2080
        %v2112 = vpop.xlane.xlu0 %2111
        %2113 = vadd.xlane.f32.xlu0 %v2082
        %v2114 = vpop.xlane.xlu0 %2113
        %v2115 = vrcp.pop %v2084
        %v2116 = vrcp.pop %v2086
        %v2117 = vrcp.pop %v2088
        %v2118 = vrcp.pop %v2090
        %v2119 = vrcp.pop %v2092
        %v2120 = vrcp.pop %v2094
        %v2121 = vrcp.pop %v2096
        %v2122 = vrcp.pop %v2098
        %v2123 = vrcp.pop %v2100
        %v2124 = vrcp.pop %v2102
        %v2125 = vrcp.pop %v2104
        %v2126 = vrcp.pop %v2106
        %v2127 = vrcp.pop %v2108
        %v2128 = vrcp.pop %v2110
        %v2129 = vrcp.pop %v2112
        %v2130 = vrcp.pop %v2114
        %v2131 = vmul.f32 %v2052, %v2115
        %v2132 = vmul.f32 %v2054, %v2116
        %v2133 = vmul.f32 %v2056, %v2117
        %v2134 = vmul.f32 %v2058, %v2118
        %v2135 = vmul.f32 %v2060, %v2119
        %v2136 = vmul.f32 %v2062, %v2120
        %v2137 = vmul.f32 %v2064, %v2121
        %v2138 = vmul.f32 %v2066, %v2122
        %v2139 = vmul.f32 %v2068, %v2123
        %v2140 = vmul.f32 %v2070, %v2124
        %v2141 = vmul.f32 %v2072, %v2125
        %v2142 = vmul.f32 %v2074, %v2126
        %v2143 = vmul.f32 %v2076, %v2127
        %v2144 = vmul.f32 %v2078, %v2128
        %v2145 = vmul.f32 %v2080, %v2129
        %v2146 = vmul.f32 %v2082, %v2130
        %v2147 = vpack.c.bf16 %v2132, %v2131
        %v2148 = vpack.c.bf16 %v2134, %v2133
        %v2149 = vpack.c.bf16 %v2136, %v2135
        %v2150 = vpack.c.bf16 %v2138, %v2137
        %v2151 = vpack.c.bf16 %v2140, %v2139
        %v2152 = vpack.c.bf16 %v2142, %v2141
        %v2153 = vpack.c.bf16 %v2144, %v2143
        %v2154 = vpack.c.bf16 %v2146, %v2145
        %2155 = vmatprep.subr.bf16.mxu0 0
        %2156 = vmatpush1.bf16.xpose.msra.mxu0 %v2154
        %2157 = vmatprep.subr.bf16.mxu0 0
        %2158 = vmatpush1.bf16.xpose.msra.mxu0 %v2153
        %2159 = vmatprep.subr.bf16.mxu0 0
        %2160 = vmatpush1.bf16.xpose.msra.mxu0 %v2152
        %2161 = vmatprep.subr.bf16.mxu0 0
        %2162 = vmatpush1.bf16.xpose.msra.mxu0 %v2151
        %2163 = vmatprep.subr.bf16.mxu0 0
        %2164 = vmatpush1.bf16.xpose.msra.mxu0 %v2150
        %2165 = vmatprep.subr.bf16.mxu0 0
        %2166 = vmatpush1.bf16.xpose.msra.mxu0 %v2149
        %2167 = vmatprep.subr.bf16.mxu0 0
        %2168 = vmatpush1.bf16.xpose.msra.mxu0 %v2148
        %2169 = vmatprep.subr.bf16.mxu0 0
        %2170 = vmatpush1.bf16.xpose.msra.mxu0 %v2147
        %2171 = vmatprep.subr.bf16.mxu0 0
        %2172 = vmatpush2.bf16.xpose.msra.mxu0 0
        %2173 = vmatprep.subr.bf16.mxu0 0
        %2174 = vmatpush2.bf16.xpose.msra.mxu0 0
        %2175 = vmatprep.subr.bf16.mxu0 0
        %2176 = vmatpush2.bf16.xpose.msra.mxu0 0
        %2177 = vmatprep.subr.bf16.mxu0 0
        %2178 = vmatpush2.bf16.xpose.msra.mxu0 0
        %2179 = vmatprep.subr.bf16.mxu0 0
        %2180 = vmatpush2.bf16.xpose.msra.mxu0 0
        %2181 = vmatprep.subr.bf16.mxu0 0
        %2182 = vmatpush2.bf16.xpose.msra.mxu0 0
        %2183 = vmatprep.subr.bf16.mxu0 0
        %2184 = vmatpush2.bf16.xpose.msra.mxu0 0
        %2185 = vmatprep.subr.bf16.mxu0 0
        %2186 = vmatpush2.bf16.xpose.msra.mxu0 0
        %2187 = vmatprep.mubr.bf16.mxu0 0
        %2188 = vmatmul.mubr.bf16.gmra.mxu0 %v1859
        %v2189 = vpop.f32.mrf.mxu0
        %v2190 = vadd.f32 0.0, %v2189
        %v2191 = vpop.f32.mrf.mxu0
        %v2192 = vpop.f32.mrf.mxu0
        %v2193 = vpop.f32.mrf.mxu0
        %2194 = vdwg.mxu0
        %v2195 = vpack.c.bf16 %v2190, %v2190
        %2196 = vst [vmem:[#allocation4 + $0xc] sm:$0xf] %v2195
        %v2197 = vld [vmem:[#allocation5] sm:$0xf]
        %v2198 = vld [vmem:[#allocation5 + $0x4] sm:$0xf]
        %v2199 = vld [vmem:[#allocation5 + $0x8] sm:$0xf]
        %v2200 = vld [vmem:[#allocation5 + $0xc] sm:$0xf]
        %v2201 = vld [vmem:[#allocation4] sm:$0xf]
        %v2202 = vld [vmem:[#allocation4 + $0x4] sm:$0xf]
        %v2203 = vld [vmem:[#allocation4 + $0x8] sm:$0xf]
        %v2204 = vld [vmem:[#allocation4 + $0xc] sm:$0xf]
        %v2205 = vld [vmem:[%s10] sm:$0xff]
        %v2206 = vld [vmem:[%s10 + $0x8] sm:$0xff]
        %v2207 = vld [vmem:[%s10 + $0x10] sm:$0xff]
        %v2208 = vld [vmem:[%s10 + $0x18] sm:$0xff]
        %2210 = vset.pattern.permute.xlu0 0
        %2211 = vperm.xlu0 %2210, %v2205
        %v2212 = vpop.permute.xlu0 %2211
        %2215 = vset.pattern.permute.xlu0 0
        %2216 = vperm.xlu0 %2215, %v2206
        %v2217 = vpop.permute.xlu0 %2216
        %2220 = vset.pattern.permute.xlu0 0
        %2221 = vperm.xlu0 %2220, %v2207
        %v2222 = vpop.permute.xlu0 %2221
        %2225 = vset.pattern.permute.xlu0 0
        %2226 = vperm.xlu0 %2225, %v2208
        %v2227 = vpop.permute.xlu0 %2226
        %v2233 = vunpack.c.l.b16 %v2197
        %v2234 = vunpack.c.l.b16 %v2198
        %v2235 = vunpack.c.l.b16 %v2199
        %v2236 = vunpack.c.l.b16 %v2200
        %v2237 = vpack.c.b16 %v2234, %v2233
        %v2238 = vpack.c.b16 %v2236, %v2235
        %v2243 = vunpack.c.l.b16 %v2201
        %v2244 = vunpack.c.l.b16 %v2202
        %v2245 = vunpack.c.l.b16 %v2203
        %v2246 = vunpack.c.l.b16 %v2204
        %v2247 = vpack.c.b16 %v2244, %v2243
        %v2248 = vpack.c.b16 %v2246, %v2245
        %v2252 = vsel %vm783, %v2237, 0
        %v2255 = vsel %vm783, %v2238, 0
        %2257 = vmatprep.subr.bf16.mxu0 0
        %2258 = vmatpush1.bf16.msra.mxu0 0
        %2259 = vmatprep.subr.bf16.mxu0 0
        %2260 = vmatpush1.bf16.msra.mxu0 0
        %2261 = vmatprep.subr.bf16.mxu0 0
        %2262 = vmatpush1.bf16.msra.mxu0 0
        %2263 = vmatprep.subr.bf16.mxu0 0
        %2264 = vmatpush1.bf16.msra.mxu0 0
        %2265 = vmatprep.subr.bf16.mxu0 0
        %2266 = vmatpush1.bf16.msra.mxu0 0
        %2267 = vmatprep.subr.bf16.mxu0 0
        %2268 = vmatpush1.bf16.msra.mxu0 0
        %2269 = vmatprep.subr.bf16.mxu0 0
        %2270 = vmatpush1.bf16.msra.mxu0 %v2248
        %2271 = vmatprep.subr.bf16.mxu0 0
        %2272 = vmatpush1.bf16.msra.mxu0 %v2247
        %2273 = vmatprep.subr.bf16.mxu0 0
        %2274 = vmatpush2.bf16.msra.mxu0 0
        %2275 = vmatprep.subr.bf16.mxu0 0
        %2276 = vmatpush2.bf16.msra.mxu0 0
        %2277 = vmatprep.subr.bf16.mxu0 0
        %2278 = vmatpush2.bf16.msra.mxu0 0
        %2279 = vmatprep.subr.bf16.mxu0 0
        %2280 = vmatpush2.bf16.msra.mxu0 0
        %2281 = vmatprep.subr.bf16.mxu0 0
        %2282 = vmatpush2.bf16.msra.mxu0 0
        %2283 = vmatprep.subr.bf16.mxu0 0
        %2284 = vmatpush2.bf16.msra.mxu0 0
        %2285 = vmatprep.subr.bf16.mxu0 0
        %2286 = vmatpush2.bf16.msra.mxu0 0
        %2287 = vmatprep.subr.bf16.mxu0 0
        %2288 = vmatpush2.bf16.msra.mxu0 0
        %2289 = vmatprep.mubr.bf16.mxu0 0
        %2290 = vmatmul.mubr.bf16.gmra.mxu0 %v2252
        %v2291 = vpop.f32.mrf.mxu0
        %v2292 = vadd.f32 %v2212, %v2291
        %v2293 = vpop.f32.mrf.mxu0
        %v2294 = vpop.f32.mrf.mxu0
        %v2295 = vadd.f32 %v2217, %v2294
        %v2296 = vpop.f32.mrf.mxu0
        %2297 = vmatprep.mubr.bf16.mxu0 0
        %2298 = vmatmul.mubr.bf16.gmra.mxu0 %v2255
        %v2299 = vpop.f32.mrf.mxu0
        %v2300 = vadd.f32 %v2222, %v2299
        %v2301 = vpop.f32.mrf.mxu0
        %v2302 = vpop.f32.mrf.mxu0
        %v2303 = vadd.f32 %v2227, %v2302
        %v2304 = vpop.f32.mrf.mxu0
        %2305 = vdwg.mxu0
        %2306 = vst [vmem:[%s446] sm:$0xff] %v2292
        %2307 = vst [vmem:[%s446 + $0x8] sm:$0xff] %v2295
        %2308 = vst [vmem:[%s446 + $0x10] sm:$0xff] %v2300
        %2309 = vst [vmem:[%s446 + $0x18] sm:$0xff] %v2303
        %s2310 = sand.u32 %s296, 1
        %s2311 = scalar_lea.sflag [#allocation7], %s2310
        %s2312 = sand.u32 %s296, 1
        %s2313 = smul.addr %s2312, 32
        %s2314 = scalar_lea.vmem [#allocation8], %s2313
        // Predicated region
        $region73: #{tpu_custom_call.1} parent=63 // pred_check
          %p2315 = pneg %p306
        $region74: #{tpu_custom_call.1} parent=63 // pred_check_branch
          %2317 = sbr.rel (%p2315) target = $region76
        $region75: #{tpu_custom_call.1} parent=63 // pred_region
          %s2319 = ssub.s32 512, 512
          %2320 = vsyncadd %s2311, %s2319
          %s2321 = smul.addr %s30, 4
          %s2322 = sadd.s32 %s31, %s2321
          %s2323 = smul.addr %s2322, 128
          %s2324 = scalar_lea.hbm %s11, %s2323
          %s2325 = sshll.u32 %s2314, 4
          %s2326 = int_to_ptr.vmem [resolvable:$true] %s2325
          %2331 = dma.vmem_to_hbm [thread:$0]  %s2326, 512, %s2324, %s2311, 128, 128, 8
        $region76: #{tpu_custom_call.1} parent=63 // pred_fallthru
          _
      $region64: #{tpu_custom_call.1} parent=5 // pred_fallthru
        _
      %p2332 = scmp.le.s32.totalorder 2, %s21
      // Predicated region
      $region77: #{tpu_custom_call.1} parent=5 // pred_check
        %p2333 = pneg %p2332
      $region78: #{tpu_custom_call.1} parent=5 // pred_check_branch
        %2335 = sbr.rel (%p2333) target = $region80
      $region79: #{tpu_custom_call.1} parent=5 // pred_region
        %s2336 = ssub.s32 %s21, 2
        // Predicated region
        $region81: #{tpu_custom_call.1} parent=79 // pred_check
          %p2337 = pneg %p312
        $region82: #{tpu_custom_call.1} parent=79 // pred_check_branch
          %2339 = sbr.rel (%p2337) target = $region84
        $region83: #{tpu_custom_call.1} parent=79 // pred_region
          %s2340 = sand.u32 %s297, 1
          %s2341 = scalar_lea.sflag [#allocation7], %s2340
          %s2342 = sand.u32 %s297, 1
          %s2343 = smul.addr %s2342, 32
          %s2344 = scalar_lea.vmem [#allocation8], %s2343
          %2345 = dma.done %s2341, 512
        $region84: #{tpu_custom_call.1} parent=79 // pred_fallthru
          _
      $region80: #{tpu_custom_call.1} parent=5 // pred_fallthru
        _
    $region6: #{tpu_custom_call.1} parent=1 // loop_footer
      %s25 = sadd.s32 1, %s21
    $region7: #{tpu_custom_call.1} parent=1 // loop_footer_branch
      %20 = sbr.rel target = $region3
    $region8: #{tpu_custom_call.1} parent=1 // loop_exit
      _
    %2346 = vsyncpa [#allocation6], 1
    %s2347 = scalar_lea.sflag [#allocation6], 1
    %2348 = vsyncpa %s2347, 1
    %2349 = vsyncpa [#allocation7], 1
    %s2350 = scalar_lea.sflag [#allocation7], 1
    %2351 = vsyncpa %s2350, 1

</llo_original>
